<compile_context>
chip_gen: v7x
topology: tpu7x:2x2x1
jax: 0.10.0
libtpu: 0.0.40
codegen_flags: <defaults>
</compile_context>

<pallas_src>
import functools

import jax
import jax.numpy as jnp
from jax.experimental import pallas as pl
from jax.experimental.pallas import tpu as pltpu


# ----------------------------- Pallas kernel ------------------------------ #
def gcn_classifier_kernel(
    x_ref, a_ref, p_ref,
    w1_ref, b1_ref, w2_ref, b2_ref, w3_ref, b3_ref,
    wl1_ref, bl1_ref, wl2_ref, bl2_ref, wl3_ref, bl3_ref,
    wl4_ref, bl4_ref,
    out_ref,
    hcat_ref,                       # VMEM scratch [NB, 2*H]: fused-conv operand
):
    adj = a_ref[0]                  # [NB, NB] bf16 diagonal block of A (dst, src)
    h = x_ref[...]                  # [NB, H] f32 (features pre-padded to H)
    half = hcat_ref.shape[-1] // 2  # = hidden

    def fused_conv(h, w_ref, b_ref):
        # neighbor aggregation sum_{j->i} h_j == A @ h, on the bf16 MXU path
        agg = jnp.dot(adj, h.astype(jnp.bfloat16),
                      preferred_element_type=jnp.float32)
        # fused root + rel matmul: [h | agg] @ [[Wr]; [Wn]]   (K = 2*hidden = 128)
        hcat_ref[:, :half] = h
        hcat_ref[:, half:] = agg
        z = jnp.dot(hcat_ref[...], w_ref[...],
                    preferred_element_type=jnp.float32) + b_ref[...]
        return jnp.maximum(z, 0.0)  # ReLU (dropout is identity in eval mode)

    h = fused_conv(h, w1_ref, b1_ref)   # conv1 -> relu
    h = fused_conv(h, w2_ref, b2_ref)   # conv2 -> relu (-> dropout == identity)
    h = fused_conv(h, w3_ref, b3_ref)   # conv3 -> relu

    # global mean pool for the graphs of this block: [GB, NB] @ [NB, H] -> [GB, H]
    pooled = jnp.dot(p_ref[0], h, preferred_element_type=jnp.float32)

    # linear_relu_stack: (Linear 64->64, ReLU, Dropout) x3, Linear 64->out_pad
    z = jnp.maximum(jnp.dot(pooled, wl1_ref[...],
                            preferred_element_type=jnp.float32) + bl1_ref[...], 0.0)
    z = jnp.maximum(jnp.dot(z, wl2_ref[...],
                            preferred_element_type=jnp.float32) + bl2_ref[...], 0.0)
    z = jnp.maximum(jnp.dot(z, wl3_ref[...],
                            preferred_element_type=jnp.float32) + bl3_ref[...], 0.0)
    out_ref[...] = (jnp.dot(z, wl4_ref[...],
                            preferred_element_type=jnp.float32) + bl4_ref[...])


# ------------------------------ JAX wrapper ------------------------------- #
def gcn_classifier_forward(x, adj_blocks, pool_blocks, params, *, out_size):
    """x: [N, F] float32; adj_blocks: [NB_BLOCKS, NB, NB] bf16 (diag blocks of A);
    pool_blocks: [NB_BLOCKS, GB, NB] float32 mean-pool rows; params pre-stacked."""
    num_blocks, nb, _ = adj_blocks.shape
    gpb = pool_blocks.shape[1]
    hidden = params["w2s"].shape[1]
    out_pad = params["wl4"].shape[1]

    # pad input features up to `hidden` (matching w1 rows are zero-padded too)
    x = x.astype(jnp.float32)
    x_pad = jnp.pad(x, ((0, 0), (0, hidden - x.shape[1])))

    weight_keys = ("w1s", "b1", "w2s", "b2", "w3s", "b3",
                   "wl1", "bl1", "wl2", "bl2", "wl3", "bl3", "wl4", "bl4")
    weights = tuple(params[k] for k in weight_keys)

    def invariant_spec(arr):       # same (whole-array) block for every grid step
        n = arr.ndim
        return pl.BlockSpec(arr.shape, lambda i, _n=n: (0,) * _n)

    in_specs = [
        pl.BlockSpec((nb, hidden), lambda i: (i, 0)),      # node features of block i
        pl.BlockSpec((1, nb, nb), lambda i: (i, 0, 0)),    # diagonal adjacency block
        pl.BlockSpec((1, gpb, nb), lambda i: (i, 0, 0)),   # pooling rows of block i
    ] + [invariant_spec(w) for w in weights]

    out = pl.pallas_call(
        gcn_classifier_kernel,
        out_shape=jax.ShapeDtypeStruct((num_blocks * gpb, out_pad), jnp.float32),
        grid_spec=pltpu.PrefetchScalarGridSpec(
            num_scalar_prefetch=0,
            grid=(num_blocks,),
            in_specs=in_specs,
            out_specs=pl.BlockSpec((gpb, out_pad), lambda i: (i, 0)),
            scratch_shapes=[pltpu.VMEM((nb, 2 * hidden), jnp.float32)],
        ),
        compiler_params=pltpu.CompilerParams(
            dimension_semantics=("parallel",)),   # megacore-shardable on v7x
    )(x_pad, adj_blocks, pool_blocks, *weights)

    return out[:, :out_size]


# --------------------- graph densification (hoisted) ----------------------- #
def build_graph_operands(edge_index, batch, *, num_nodes, num_graphs,
                         graphs_per_block, nodes_per_block):
    """Densify the graph structure ONCE per graph batch (outside the hot path).

    Assumes PyG batching layout: nodes of each graph are contiguous, all graphs
    have the same node count, and edges stay within a graph, so the global
    adjacency is block-diagonal and only the diagonal blocks are materialized.
    """
    num_blocks = num_graphs // graphs_per_block
    src, dst = edge_index[0], edge_index[1]
    blk = dst // nodes_per_block
    adj = jnp.zeros((num_blocks, nodes_per_block, nodes_per_block), jnp.float32)
    adj = adj.at[blk, dst % nodes_per_block, src % nodes_per_block].add(1.0)
    adj = adj.astype(jnp.bfloat16)   # small integer edge counts -> exact in bf16

    node = jnp.arange(num_nodes)
    pool = jnp.zeros((num_blocks, graphs_per_block, nodes_per_block), jnp.float32)
    pool = pool.at[batch // graphs_per_block, batch % graphs_per_block,
                   node % nodes_per_block].add(1.0)
    counts = pool.sum(axis=-1, keepdims=True)
    pool = pool / jnp.maximum(counts, 1.0)       # rows sum to 1 -> mean pool
    return adj, pool


# --------------------------- parameter handling ----------------------------- #
def init_params(key, input_size, hidden, output_size):
    def linear(k, fan_in, fan_out):
        kw, kb = jax.random.split(k)
        bound = 1.0 / jnp.sqrt(fan_in)
        w = jax.random.uniform(kw, (fan_in, fan_out), jnp.float32, -bound, bound)
        b = jax.random.uniform(kb, (1, fan_out), jnp.float32, -bound, bound)
        return w, b

    keys = jax.random.split(key, 10)
    p = {}
    # GraphConv layers: lin_root (no bias) + lin_rel (with bias)
    p["w1r"], _ = linear(keys[0], input_size, hidden)
    p["w1n"], p["b1"] = linear(keys[1], input_size, hidden)
    p["w2r"], _ = linear(keys[2], hidden, hidden)
    p["w2n"], p["b2"] = linear(keys[3], hidden, hidden)
    p["w3r"], _ = linear(keys[4], hidden, hidden)
    p["w3n"], p["b3"] = linear(keys[5], hidden, hidden)
    # MLP head
    p["wl1"], p["bl1"] = linear(keys[6], hidden, hidden)
    p["wl2"], p["bl2"] = linear(keys[7], hidden, hidden)
    p["wl3"], p["bl3"] = linear(keys[8], hidden, hidden)
    p["wl4"], p["bl4"] = linear(keys[9], hidden, output_size)
    return p


def prepare_params(p, *, hidden, output_size, out_pad=128):
    """Pre-stack GraphConv weights ([Wr; Wn] along the contraction axis, with the
    conv1 input dim zero-padded to `hidden`) and pad the classifier output lane
    dim to `out_pad` so the kernel writes a lane-dense slab."""
    def pad_rows(w, rows):
        return jnp.pad(w, ((0, rows - w.shape[0]), (0, 0)))

    return {
        "w1s": jnp.concatenate([pad_rows(p["w1r"], hidden),
                                pad_rows(p["w1n"], hidden)], axis=0),  # [2H, H]
        "b1": p["b1"],
        "w2s": jnp.concatenate([p["w2r"], p["w2n"]], axis=0),
        "b2": p["b2"],
        "w3s": jnp.concatenate([p["w3r"], p["w3n"]], axis=0),
        "b3": p["b3"],
        "wl1": p["wl1"], "bl1": p["bl1"],
        "wl2": p["wl2"], "bl2": p["bl2"],
        "wl3": p["wl3"], "bl3": p["bl3"],
        "wl4": jnp.pad(p["wl4"], ((0, 0), (0, out_pad - output_size))),
        "bl4": jnp.pad(p["bl4"], ((0, 0), (0, out_pad - output_size))),
    }


# ----------------------- plain-JAX reference (f32) -------------------------- #
def _reference_forward(x, edge_index, batch, params, num_graphs):
    n = x.shape[0]
    src, dst = edge_index[0], edge_index[1]
    adj = jnp.zeros((n, n), jnp.float32).at[dst, src].add(1.0)
    one_hot = (batch[None, :] == jnp.arange(num_graphs)[:, None]).astype(jnp.float32)
    pool = one_hot / jnp.maximum(one_hot.sum(1, keepdims=True), 1.0)

    def conv(h, wr, wn, b):
        return h @ wr + (adj @ h) @ wn + b

    h = jax.nn.relu(conv(x, params["w1r"], params["w1n"], params["b1"]))
    h = jax.nn.relu(conv(h, params["w2r"], params["w2n"], params["b2"]))
    h = jax.nn.relu(conv(h, params["w3r"], params["w3n"], params["b3"]))
    g = pool @ h
    g = jax.nn.relu(g @ params["wl1"] + params["bl1"])
    g = jax.nn.relu(g @ params["wl2"] + params["bl2"])
    g = jax.nn.relu(g @ params["wl3"] + params["bl3"])
    return g @ params["wl4"] + params["bl4"]


# ---------------------------------- main ----------------------------------- #
if __name__ == "__main__":
    INPUT_SIZE = 4          # per-node feature dim (facemesh coords, padded)
    HIDDEN = 64
    OUTPUT_SIZE = 8         # number of classes
    OUT_PAD = 128           # lane-dense padded classifier width

    NODES_PER_GRAPH = 16    # same topology for every facemesh graph
    GRAPHS_PER_BLOCK = 8    # -> 128 node rows per grid step (full MXU M)
    NUM_BLOCKS = 2          # grid size (parallel axis)
    NUM_GRAPHS = GRAPHS_PER_BLOCK * NUM_BLOCKS          # 16
    N_NODES = NUM_GRAPHS * NODES_PER_GRAPH              # 256
    NODES_PER_BLOCK = GRAPHS_PER_BLOCK * NODES_PER_GRAPH  # 128
    EDGES_PER_GRAPH = 48

    root = jax.random.PRNGKey(0)
    k_par, k_x, k_src, k_dst = jax.random.split(root, 4)

    params = init_params(k_par, INPUT_SIZE, HIDDEN, OUTPUT_SIZE)
    prepped = prepare_params(params, hidden=HIDDEN, output_size=OUTPUT_SIZE,
                             out_pad=OUT_PAD)

    x = jax.random.normal(k_x, (N_NODES, INPUT_SIZE), jnp.float32)

    # random within-graph edges (PyG batching: each graph's nodes contiguous)
    src_local = jax.random.randint(k_src, (NUM_GRAPHS, EDGES_PER_GRAPH),
                                   0, NODES_PER_GRAPH, dtype=jnp.int32)
    dst_local = jax.random.randint(k_dst, (NUM_GRAPHS, EDGES_PER_GRAPH),
                                   0, NODES_PER_GRAPH, dtype=jnp.int32)
    offsets = (jnp.arange(NUM_GRAPHS, dtype=jnp.int32) * NODES_PER_GRAPH)[:, None]
    edge_index = jnp.stack([(src_local + offsets).reshape(-1),
                            (dst_local + offsets).reshape(-1)], axis=0)
    batch = jnp.repeat(jnp.arange(NUM_GRAPHS, dtype=jnp.int32), NODES_PER_GRAPH)

    # Densification hoisted out of the per-call hot path (cache per graph batch).
    adj_blocks, pool_blocks = build_graph_operands(
        edge_index, batch, num_nodes=N_NODES, num_graphs=NUM_GRAPHS,
        graphs_per_block=GRAPHS_PER_BLOCK, nodes_per_block=NODES_PER_BLOCK)

    fwd = jax.jit(functools.partial(gcn_classifier_forward, out_size=OUTPUT_SIZE))
    out = fwd(x, adj_blocks, pool_blocks, prepped)
    out = jax.block_until_ready(out)

    assert out.shape == (NUM_GRAPHS, OUTPUT_SIZE)
    assert bool(jnp.all(jnp.isfinite(out)))

    # correctness check vs. pure-f32 reference (bf16 aggregation -> small error)
    ref = _reference_forward(x, edge_index, batch, params, NUM_GRAPHS)
    scale = float(jnp.maximum(jnp.max(jnp.abs(ref)), 1.0))
    rel_err = float(jnp.max(jnp.abs(out - ref))) / scale
    assert rel_err < 5e-2, f"relative error too large: {rel_err}"

    print("KERNEL_OK")
</pallas_src>

<mosaic_0001>
module attributes {stable_mosaic.version = 11 : i64} {
  func.func @gcn_classifier_kernel(%arg0: i32, %arg1: memref<128x64xf32, #tpu.memory_space<vmem>>, %arg2: memref<1x128x128xbf16, #tpu.memory_space<vmem>>, %arg3: memref<1x8x128xf32, #tpu.memory_space<vmem>>, %arg4: memref<128x64xf32, #tpu.memory_space<vmem>>, %arg5: memref<1x64xf32, #tpu.memory_space<vmem>>, %arg6: memref<128x64xf32, #tpu.memory_space<vmem>>, %arg7: memref<1x64xf32, #tpu.memory_space<vmem>>, %arg8: memref<128x64xf32, #tpu.memory_space<vmem>>, %arg9: memref<1x64xf32, #tpu.memory_space<vmem>>, %arg10: memref<64x64xf32, #tpu.memory_space<vmem>>, %arg11: memref<1x64xf32, #tpu.memory_space<vmem>>, %arg12: memref<64x64xf32, #tpu.memory_space<vmem>>, %arg13: memref<1x64xf32, #tpu.memory_space<vmem>>, %arg14: memref<64x64xf32, #tpu.memory_space<vmem>>, %arg15: memref<1x64xf32, #tpu.memory_space<vmem>>, %arg16: memref<64x128xf32, #tpu.memory_space<vmem>>, %arg17: memref<1x128xf32, #tpu.memory_space<vmem>>, %arg18: memref<8x128xf32, #tpu.memory_space<vmem>>, %arg19: memref<128x128xf32, #tpu.memory_space<vmem>>) attributes {dimension_semantics = [#tpu.dimension_semantics<parallel>], iteration_bounds = array<i64: 2>, scalar_prefetch = 0 : i64, scratch_operands = 1 : i64, tpu.core_type = #tpu.core_type<tc>, window_params = [{transform_indices = @transform_0, window_bounds = array<i64: 128, 64>}, {transform_indices = @transform_1, window_bounds = array<i64: 1, 128, 128>}, {transform_indices = @transform_2, window_bounds = array<i64: 1, 8, 128>}, {pipeline_mode = #tpu.pipeline_mode<synchronous>, transform_indices = @transform_3, window_bounds = array<i64: 128, 64>}, {pipeline_mode = #tpu.pipeline_mode<synchronous>, transform_indices = @transform_4, window_bounds = array<i64: 1, 64>}, {pipeline_mode = #tpu.pipeline_mode<synchronous>, transform_indices = @transform_5, window_bounds = array<i64: 128, 64>}, {pipeline_mode = #tpu.pipeline_mode<synchronous>, transform_indices = @transform_6, window_bounds = array<i64: 1, 64>}, {pipeline_mode = #tpu.pipeline_mode<synchronous>, transform_indices = @transform_7, window_bounds = array<i64: 128, 64>}, {pipeline_mode = #tpu.pipeline_mode<synchronous>, transform_indices = @transform_8, window_bounds = array<i64: 1, 64>}, {pipeline_mode = #tpu.pipeline_mode<synchronous>, transform_indices = @transform_9, window_bounds = array<i64: 64, 64>}, {pipeline_mode = #tpu.pipeline_mode<synchronous>, transform_indices = @transform_10, window_bounds = array<i64: 1, 64>}, {pipeline_mode = #tpu.pipeline_mode<synchronous>, transform_indices = @transform_11, window_bounds = array<i64: 64, 64>}, {pipeline_mode = #tpu.pipeline_mode<synchronous>, transform_indices = @transform_12, window_bounds = array<i64: 1, 64>}, {pipeline_mode = #tpu.pipeline_mode<synchronous>, transform_indices = @transform_13, window_bounds = array<i64: 64, 64>}, {pipeline_mode = #tpu.pipeline_mode<synchronous>, transform_indices = @transform_14, window_bounds = array<i64: 1, 64>}, {pipeline_mode = #tpu.pipeline_mode<synchronous>, transform_indices = @transform_15, window_bounds = array<i64: 64, 128>}, {pipeline_mode = #tpu.pipeline_mode<synchronous>, transform_indices = @transform_16, window_bounds = array<i64: 1, 128>}, {transform_indices = @transform_17, window_bounds = array<i64: 8, 128>}]} {
    %c0 = arith.constant 0 : index
    %c0_0 = arith.constant 0 : index
    %c0_1 = arith.constant 0 : index
    %0 = vector.load %arg2[%c0, %c0_0, %c0_1] : memref<1x128x128xbf16, #tpu.memory_space<vmem>>, vector<1x128x128xbf16>
    %1 = vector.shape_cast %0 : vector<1x128x128xbf16> to vector<128x128xbf16>
    %c0_2 = arith.constant 0 : index
    %c0_3 = arith.constant 0 : index
    %2 = vector.load %arg1[%c0_2, %c0_3] : memref<128x64xf32, #tpu.memory_space<vmem>>, vector<128x64xf32>
    %3 = arith.truncf %2 : vector<128x64xf32> to vector<128x64xbf16>
    %cst = arith.constant dense<0.000000e+00> : vector<128x64xf32>
    %4 = tpu.matmul %1, %3, %cst {dimension_numbers = #tpu.dot_dimension_numbers<[1], [0], [0], [1], [0, 0, 1, 1], [], []>} : vector<128x128xbf16>, vector<128x64xbf16>, vector<128x64xf32> -> vector<128x64xf32>
    %c0_4 = arith.constant 0 : index
    %c0_5 = arith.constant 0 : index
    %5 = vector.load %arg19[%c0_4, %c0_5] : memref<128x128xf32, #tpu.memory_space<vmem>>, vector<128x64xf32>
    tpu.vector_store %arg19[%c0_4, %c0_5], %2 {strides = array<i32>} : memref<128x128xf32, #tpu.memory_space<vmem>>, vector<128x64xf32>,
    %c0_6 = arith.constant 0 : index
    %c64 = arith.constant 64 : index
    %6 = vector.load %arg19[%c0_6, %c64] : memref<128x128xf32, #tpu.memory_space<vmem>>, vector<128x64xf32>
    tpu.vector_store %arg19[%c0_6, %c64], %4 {strides = array<i32>} : memref<128x128xf32, #tpu.memory_space<vmem>>, vector<128x64xf32>,
    %c0_7 = arith.constant 0 : index
    %c0_8 = arith.constant 0 : index
    %7 = vector.load %arg19[%c0_7, %c0_8] : memref<128x128xf32, #tpu.memory_space<vmem>>, vector<128x128xf32>
    %c0_9 = arith.constant 0 : index
    %c0_10 = arith.constant 0 : index
    %8 = vector.load %arg4[%c0_9, %c0_10] : memref<128x64xf32, #tpu.memory_space<vmem>>, vector<128x64xf32>
    %cst_11 = arith.constant dense<0.000000e+00> : vector<128x64xf32>
    %9 = tpu.matmul %7, %8, %cst_11 {dimension_numbers = #tpu.dot_dimension_numbers<[1], [0], [0], [1], [0, 0, 1, 1], [], []>} : vector<128x128xf32>, vector<128x64xf32>, vector<128x64xf32> -> vector<128x64xf32>
    %c0_12 = arith.constant 0 : index
    %c0_13 = arith.constant 0 : index
    %10 = vector.load %arg5[%c0_12, %c0_13] : memref<1x64xf32, #tpu.memory_space<vmem>>, vector<1x64xf32>
    %11 = vector.broadcast %10 : vector<1x64xf32> to vector<128x64xf32>
    %12 = arith.addf %9, %11 : vector<128x64xf32>
    %cst_14 = arith.constant 0.000000e+00 : f32
    %13 = vector.broadcast %cst_14 : f32 to vector<128x64xf32>
    %14 = arith.maximumf %12, %13 : vector<128x64xf32>
    %15 = arith.truncf %14 : vector<128x64xf32> to vector<128x64xbf16>
    %cst_15 = arith.constant dense<0.000000e+00> : vector<128x64xf32>
    %16 = tpu.matmul %1, %15, %cst_15 {dimension_numbers = #tpu.dot_dimension_numbers<[1], [0], [0], [1], [0, 0, 1, 1], [], []>} : vector<128x128xbf16>, vector<128x64xbf16>, vector<128x64xf32> -> vector<128x64xf32>
    %c0_16 = arith.constant 0 : index
    %c0_17 = arith.constant 0 : index
    %17 = vector.load %arg19[%c0_16, %c0_17] : memref<128x128xf32, #tpu.memory_space<vmem>>, vector<128x64xf32>
    tpu.vector_store %arg19[%c0_16, %c0_17], %14 {strides = array<i32>} : memref<128x128xf32, #tpu.memory_space<vmem>>, vector<128x64xf32>,
    %c0_18 = arith.constant 0 : index
    %c64_19 = arith.constant 64 : index
    %18 = vector.load %arg19[%c0_18, %c64_19] : memref<128x128xf32, #tpu.memory_space<vmem>>, vector<128x64xf32>
    tpu.vector_store %arg19[%c0_18, %c64_19], %16 {strides = array<i32>} : memref<128x128xf32, #tpu.memory_space<vmem>>, vector<128x64xf32>,
    %c0_20 = arith.constant 0 : index
    %c0_21 = arith.constant 0 : index
    %19 = vector.load %arg19[%c0_20, %c0_21] : memref<128x128xf32, #tpu.memory_space<vmem>>, vector<128x128xf32>
    %c0_22 = arith.constant 0 : index
    %c0_23 = arith.constant 0 : index
    %20 = vector.load %arg6[%c0_22, %c0_23] : memref<128x64xf32, #tpu.memory_space<vmem>>, vector<128x64xf32>
    %cst_24 = arith.constant dense<0.000000e+00> : vector<128x64xf32>
    %21 = tpu.matmul %19, %20, %cst_24 {dimension_numbers = #tpu.dot_dimension_numbers<[1], [0], [0], [1], [0, 0, 1, 1], [], []>} : vector<128x128xf32>, vector<128x64xf32>, vector<128x64xf32> -> vector<128x64xf32>
    %c0_25 = arith.constant 0 : index
    %c0_26 = arith.constant 0 : index
    %22 = vector.load %arg7[%c0_25, %c0_26] : memref<1x64xf32, #tpu.memory_space<vmem>>, vector<1x64xf32>
    %23 = vector.broadcast %22 : vector<1x64xf32> to vector<128x64xf32>
    %24 = arith.addf %21, %23 : vector<128x64xf32>
    %cst_27 = arith.constant 0.000000e+00 : f32
    %25 = vector.broadcast %cst_27 : f32 to vector<128x64xf32>
    %26 = arith.maximumf %24, %25 : vector<128x64xf32>
    %27 = arith.truncf %26 : vector<128x64xf32> to vector<128x64xbf16>
    %cst_28 = arith.constant dense<0.000000e+00> : vector<128x64xf32>
    %28 = tpu.matmul %1, %27, %cst_28 {dimension_numbers = #tpu.dot_dimension_numbers<[1], [0], [0], [1], [0, 0, 1, 1], [], []>} : vector<128x128xbf16>, vector<128x64xbf16>, vector<128x64xf32> -> vector<128x64xf32>
    %c0_29 = arith.constant 0 : index
    %c0_30 = arith.constant 0 : index
    %29 = vector.load %arg19[%c0_29, %c0_30] : memref<128x128xf32, #tpu.memory_space<vmem>>, vector<128x64xf32>
    tpu.vector_store %arg19[%c0_29, %c0_30], %26 {strides = array<i32>} : memref<128x128xf32, #tpu.memory_space<vmem>>, vector<128x64xf32>,
    %c0_31 = arith.constant 0 : index
    %c64_32 = arith.constant 64 : index
    %30 = vector.load %arg19[%c0_31, %c64_32] : memref<128x128xf32, #tpu.memory_space<vmem>>, vector<128x64xf32>
    tpu.vector_store %arg19[%c0_31, %c64_32], %28 {strides = array<i32>} : memref<128x128xf32, #tpu.memory_space<vmem>>, vector<128x64xf32>,
    %c0_33 = arith.constant 0 : index
    %c0_34 = arith.constant 0 : index
    %31 = vector.load %arg19[%c0_33, %c0_34] : memref<128x128xf32, #tpu.memory_space<vmem>>, vector<128x128xf32>
    %c0_35 = arith.constant 0 : index
    %c0_36 = arith.constant 0 : index
    %32 = vector.load %arg8[%c0_35, %c0_36] : memref<128x64xf32, #tpu.memory_space<vmem>>, vector<128x64xf32>
    %cst_37 = arith.constant dense<0.000000e+00> : vector<128x64xf32>
    %33 = tpu.matmul %31, %32, %cst_37 {dimension_numbers = #tpu.dot_dimension_numbers<[1], [0], [0], [1], [0, 0, 1, 1], [], []>} : vector<128x128xf32>, vector<128x64xf32>, vector<128x64xf32> -> vector<128x64xf32>
    %c0_38 = arith.constant 0 : index
    %c0_39 = arith.constant 0 : index
    %34 = vector.load %arg9[%c0_38, %c0_39] : memref<1x64xf32, #tpu.memory_space<vmem>>, vector<1x64xf32>
    %35 = vector.broadcast %34 : vector<1x64xf32> to vector<128x64xf32>
    %36 = arith.addf %33, %35 : vector<128x64xf32>
    %cst_40 = arith.constant 0.000000e+00 : f32
    %37 = vector.broadcast %cst_40 : f32 to vector<128x64xf32>
    %38 = arith.maximumf %36, %37 : vector<128x64xf32>
    %c0_41 = arith.constant 0 : index
    %c0_42 = arith.constant 0 : index
    %c0_43 = arith.constant 0 : index
    %39 = vector.load %arg3[%c0_41, %c0_42, %c0_43] : memref<1x8x128xf32, #tpu.memory_space<vmem>>, vector<1x8x128xf32>
    %40 = vector.shape_cast %39 : vector<1x8x128xf32> to vector<8x128xf32>
    %cst_44 = arith.constant dense<0.000000e+00> : vector<8x64xf32>
    %41 = tpu.matmul %40, %38, %cst_44 {dimension_numbers = #tpu.dot_dimension_numbers<[1], [0], [0], [1], [0, 0, 1, 1], [], []>} : vector<8x128xf32>, vector<128x64xf32>, vector<8x64xf32> -> vector<8x64xf32>
    %c0_45 = arith.constant 0 : index
    %c0_46 = arith.constant 0 : index
    %42 = vector.load %arg10[%c0_45, %c0_46] : memref<64x64xf32, #tpu.memory_space<vmem>>, vector<64x64xf32>
    %cst_47 = arith.constant dense<0.000000e+00> : vector<8x64xf32>
    %43 = tpu.matmul %41, %42, %cst_47 {dimension_numbers = #tpu.dot_dimension_numbers<[1], [0], [0], [1], [0, 0, 1, 1], [], []>} : vector<8x64xf32>, vector<64x64xf32>, vector<8x64xf32> -> vector<8x64xf32>
    %c0_48 = arith.constant 0 : index
    %c0_49 = arith.constant 0 : index
    %44 = vector.load %arg11[%c0_48, %c0_49] : memref<1x64xf32, #tpu.memory_space<vmem>>, vector<1x64xf32>
    %45 = vector.broadcast %44 : vector<1x64xf32> to vector<8x64xf32>
    %46 = arith.addf %43, %45 : vector<8x64xf32>
    %cst_50 = arith.constant 0.000000e+00 : f32
    %47 = vector.broadcast %cst_50 : f32 to vector<8x64xf32>
    %48 = arith.maximumf %46, %47 : vector<8x64xf32>
    %c0_51 = arith.constant 0 : index
    %c0_52 = arith.constant 0 : index
    %49 = vector.load %arg12[%c0_51, %c0_52] : memref<64x64xf32, #tpu.memory_space<vmem>>, vector<64x64xf32>
    %cst_53 = arith.constant dense<0.000000e+00> : vector<8x64xf32>
    %50 = tpu.matmul %48, %49, %cst_53 {dimension_numbers = #tpu.dot_dimension_numbers<[1], [0], [0], [1], [0, 0, 1, 1], [], []>} : vector<8x64xf32>, vector<64x64xf32>, vector<8x64xf32> -> vector<8x64xf32>
    %c0_54 = arith.constant 0 : index
    %c0_55 = arith.constant 0 : index
    %51 = vector.load %arg13[%c0_54, %c0_55] : memref<1x64xf32, #tpu.memory_space<vmem>>, vector<1x64xf32>
    %52 = vector.broadcast %51 : vector<1x64xf32> to vector<8x64xf32>
    %53 = arith.addf %50, %52 : vector<8x64xf32>
    %cst_56 = arith.constant 0.000000e+00 : f32
    %54 = vector.broadcast %cst_56 : f32 to vector<8x64xf32>
    %55 = arith.maximumf %53, %54 : vector<8x64xf32>
    %c0_57 = arith.constant 0 : index
    %c0_58 = arith.constant 0 : index
    %56 = vector.load %arg14[%c0_57, %c0_58] : memref<64x64xf32, #tpu.memory_space<vmem>>, vector<64x64xf32>
    %cst_59 = arith.constant dense<0.000000e+00> : vector<8x64xf32>
    %57 = tpu.matmul %55, %56, %cst_59 {dimension_numbers = #tpu.dot_dimension_numbers<[1], [0], [0], [1], [0, 0, 1, 1], [], []>} : vector<8x64xf32>, vector<64x64xf32>, vector<8x64xf32> -> vector<8x64xf32>
    %c0_60 = arith.constant 0 : index
    %c0_61 = arith.constant 0 : index
    %58 = vector.load %arg15[%c0_60, %c0_61] : memref<1x64xf32, #tpu.memory_space<vmem>>, vector<1x64xf32>
    %59 = vector.broadcast %58 : vector<1x64xf32> to vector<8x64xf32>
    %60 = arith.addf %57, %59 : vector<8x64xf32>
    %cst_62 = arith.constant 0.000000e+00 : f32
    %61 = vector.broadcast %cst_62 : f32 to vector<8x64xf32>
    %62 = arith.maximumf %60, %61 : vector<8x64xf32>
    %c0_63 = arith.constant 0 : index
    %c0_64 = arith.constant 0 : index
    %63 = vector.load %arg16[%c0_63, %c0_64] : memref<64x128xf32, #tpu.memory_space<vmem>>, vector<64x128xf32>
    %cst_65 = arith.constant dense<0.000000e+00> : vector<8x128xf32>
    %64 = tpu.matmul %62, %63, %cst_65 {dimension_numbers = #tpu.dot_dimension_numbers<[1], [0], [0], [1], [0, 0, 1, 1], [], []>} : vector<8x64xf32>, vector<64x128xf32>, vector<8x128xf32> -> vector<8x128xf32>
    %c0_66 = arith.constant 0 : index
    %c0_67 = arith.constant 0 : index
    %65 = vector.load %arg17[%c0_66, %c0_67] : memref<1x128xf32, #tpu.memory_space<vmem>>, vector<1x128xf32>
    %66 = vector.broadcast %65 : vector<1x128xf32> to vector<8x128xf32>
    %67 = arith.addf %64, %66 : vector<8x128xf32>
    %c0_68 = arith.constant 0 : index
    %c0_69 = arith.constant 0 : index
    %68 = vector.load %arg18[%c0_68, %c0_69] : memref<8x128xf32, #tpu.memory_space<vmem>>, vector<8x128xf32>
    tpu.vector_store %arg18[%c0_68, %c0_69], %67 {strides = array<i32>} : memref<8x128xf32, #tpu.memory_space<vmem>>, vector<8x128xf32>,
    return
  }
  func.func @transform_0(%arg0: i32) -> (i32, i32) {
    %c0_i32 = arith.constant 0 : i32
    %c0_i32_0 = arith.constant 0 : i32
    return %arg0, %c0_i32 : i32, i32
  }
  func.func @transform_1(%arg0: i32) -> (i32, i32, i32) {
    %c0_i32 = arith.constant 0 : i32
    %c0_i32_0 = arith.constant 0 : i32
    %c0_i32_1 = arith.constant 0 : i32
    return %arg0, %c0_i32, %c0_i32_0 : i32, i32, i32
  }
  func.func @transform_2(%arg0: i32) -> (i32, i32, i32) {
    %c0_i32 = arith.constant 0 : i32
    %c0_i32_0 = arith.constant 0 : i32
    %c0_i32_1 = arith.constant 0 : i32
    return %arg0, %c0_i32, %c0_i32_0 : i32, i32, i32
  }
  func.func @transform_3(%arg0: i32) -> (i32, i32) {
    %c0_i32 = arith.constant 0 : i32
    %c0_i32_0 = arith.constant 0 : i32
    %c0_i32_1 = arith.constant 0 : i32
    return %c0_i32, %c0_i32_0 : i32, i32
  }
  func.func @transform_4(%arg0: i32) -> (i32, i32) {
    %c0_i32 = arith.constant 0 : i32
    %c0_i32_0 = arith.constant 0 : i32
    %c0_i32_1 = arith.constant 0 : i32
    return %c0_i32, %c0_i32_0 : i32, i32
  }
  func.func @transform_5(%arg0: i32) -> (i32, i32) {
    %c0_i32 = arith.constant 0 : i32
    %c0_i32_0 = arith.constant 0 : i32
    %c0_i32_1 = arith.constant 0 : i32
    return %c0_i32, %c0_i32_0 : i32, i32
  }
  func.func @transform_6(%arg0: i32) -> (i32, i32) {
    %c0_i32 = arith.constant 0 : i32
    %c0_i32_0 = arith.constant 0 : i32
    %c0_i32_1 = arith.constant 0 : i32
    return %c0_i32, %c0_i32_0 : i32, i32
  }
  func.func @transform_7(%arg0: i32) -> (i32, i32) {
    %c0_i32 = arith.constant 0 : i32
    %c0_i32_0 = arith.constant 0 : i32
    %c0_i32_1 = arith.constant 0 : i32
    return %c0_i32, %c0_i32_0 : i32, i32
  }
  func.func @transform_8(%arg0: i32) -> (i32, i32) {
    %c0_i32 = arith.constant 0 : i32
    %c0_i32_0 = arith.constant 0 : i32
    %c0_i32_1 = arith.constant 0 : i32
    return %c0_i32, %c0_i32_0 : i32, i32
  }
  func.func @transform_9(%arg0: i32) -> (i32, i32) {
    %c0_i32 = arith.constant 0 : i32
    %c0_i32_0 = arith.constant 0 : i32
    %c0_i32_1 = arith.constant 0 : i32
    return %c0_i32, %c0_i32_0 : i32, i32
  }
  func.func @transform_10(%arg0: i32) -> (i32, i32) {
    %c0_i32 = arith.constant 0 : i32
    %c0_i32_0 = arith.constant 0 : i32
    %c0_i32_1 = arith.constant 0 : i32
    return %c0_i32, %c0_i32_0 : i32, i32
  }
  func.func @transform_11(%arg0: i32) -> (i32, i32) {
    %c0_i32 = arith.constant 0 : i32
    %c0_i32_0 = arith.constant 0 : i32
    %c0_i32_1 = arith.constant 0 : i32
    return %c0_i32, %c0_i32_0 : i32, i32
  }
  func.func @transform_12(%arg0: i32) -> (i32, i32) {
    %c0_i32 = arith.constant 0 : i32
    %c0_i32_0 = arith.constant 0 : i32
    %c0_i32_1 = arith.constant 0 : i32
    return %c0_i32, %c0_i32_0 : i32, i32
  }
  func.func @transform_13(%arg0: i32) -> (i32, i32) {
    %c0_i32 = arith.constant 0 : i32
    %c0_i32_0 = arith.constant 0 : i32
    %c0_i32_1 = arith.constant 0 : i32
    return %c0_i32, %c0_i32_0 : i32, i32
  }
  func.func @transform_14(%arg0: i32) -> (i32, i32) {
    %c0_i32 = arith.constant 0 : i32
    %c0_i32_0 = arith.constant 0 : i32
    %c0_i32_1 = arith.constant 0 : i32
    return %c0_i32, %c0_i32_0 : i32, i32
  }
  func.func @transform_15(%arg0: i32) -> (i32, i32) {
    %c0_i32 = arith.constant 0 : i32
    %c0_i32_0 = arith.constant 0 : i32
    %c0_i32_1 = arith.constant 0 : i32
    return %c0_i32, %c0_i32_0 : i32, i32
  }
  func.func @transform_16(%arg0: i32) -> (i32, i32) {
    %c0_i32 = arith.constant 0 : i32
    %c0_i32_0 = arith.constant 0 : i32
    %c0_i32_1 = arith.constant 0 : i32
    return %c0_i32, %c0_i32_0 : i32, i32
  }
  func.func @transform_17(%arg0: i32) -> (i32, i32) {
    %c0_i32 = arith.constant 0 : i32
    %c0_i32_0 = arith.constant 0 : i32
    return %arg0, %c0_i32 : i32, i32
  }
}

</mosaic_0001>

<llo_original>
// kernel: gcn_classifier_forward.1
$region0: #{gcn_classifier_forward.1}
  #allocation0 [shape = 'u32[]', space=smem, size = 0x4, offset = 0x4, fixed_abs, tag = 'smem constant byte address 0x4 - core index']
  #allocation1 [shape = 'u32[144,128]{1,0:T(1,128)}', space=vmem, size = 0x12000, scoped, tag = 'internal scratch']
  #allocation2 [shape = 'f32[128,128]{1,0:T(8,128)}', space=vmem, size = 0x10000, scoped, tag = 'scratch operand']
  %s0 = inlined_call_operand.vmem [shape: f32[256,64], index: 0, kind: input, shape index: {}]
  %s1 = inlined_call_operand.vmem [shape: bf16[2,128,128], index: 1, kind: input, shape index: {}]
  %s2 = inlined_call_operand.vmem [shape: f32[2,8,128], index: 2, kind: input, shape index: {}]
  %s3 = inlined_call_operand.vmem [shape: f32[128,64], index: 3, kind: input, shape index: {}]
  %s4 = inlined_call_operand.vmem [shape: f32[1,64], index: 4, kind: input, shape index: {}]
  %s5 = inlined_call_operand.vmem [shape: f32[128,64], index: 5, kind: input, shape index: {}]
  %s6 = inlined_call_operand.vmem [shape: f32[1,64], index: 6, kind: input, shape index: {}]
  %s7 = inlined_call_operand.vmem [shape: f32[128,64], index: 7, kind: input, shape index: {}]
  %s8 = inlined_call_operand.vmem [shape: f32[1,64], index: 8, kind: input, shape index: {}]
  %s9 = inlined_call_operand.vmem [shape: f32[64,64], index: 9, kind: input, shape index: {}]
  %s10 = inlined_call_operand.vmem [shape: f32[1,64], index: 10, kind: input, shape index: {}]
  %s11 = inlined_call_operand.vmem [shape: f32[64,64], index: 11, kind: input, shape index: {}]
  %s12 = inlined_call_operand.vmem [shape: f32[1,64], index: 12, kind: input, shape index: {}]
  %s13 = inlined_call_operand.vmem [shape: f32[64,64], index: 13, kind: input, shape index: {}]
  %s14 = inlined_call_operand.vmem [shape: f32[1,64], index: 14, kind: input, shape index: {}]
  %s15 = inlined_call_operand.vmem [shape: f32[64,128], index: 15, kind: input, shape index: {}]
  %s16 = inlined_call_operand.vmem [shape: f32[1,128], index: 16, kind: input, shape index: {}]
  %s17 = inlined_call_operand.vmem [shape: f32[16,128], index: 17, kind: output, shape index: {}]
  %s18 = sld [smem:[#allocation0]]
  $region101: #{gcn_classifier_forward.1} parent=0
    _
  %s20 = ssub.s32 1, %s18
  %s21 = scalar_select 0, %s20, %s18
  loop: start=0, step=1, limit=4
  $region2: #{gcn_classifier_forward.1} parent=0 // loop_pre_header
    _
  $region3: #{gcn_classifier_forward.1} parent=0 // loop_header
    %s23 = sphi 0, %s27
    %p24 = scmp.ge.s32.totalorder %s23, 4
    %s33 = sphi 0, %s35
    %s36 = sphi 0, %s33
    %s37 = sphi 0, %s36
    %s53 = sphi 0, %s37
    %s59 = sphi 0, %s61
    %s62 = sphi 0, %s59
    %s63 = sphi 0, %s62
    %s79 = sphi 0, %s63
    %s85 = sphi 0, %s87
    %s88 = sphi 0, %s85
    %s89 = sphi 0, %s88
    %s105 = sphi 0, %s89
    %s109 = sphi 0, %s109
    %s111 = sphi 0, %s109
    %s112 = sphi 0, %s111
    %s126 = sphi 0, %s112
    %s130 = sphi 0, %s130
    %s132 = sphi 0, %s130
    %s133 = sphi 0, %s132
    %s147 = sphi 0, %s133
    %s151 = sphi 0, %s151
    %s153 = sphi 0, %s151
    %s154 = sphi 0, %s153
    %s168 = sphi 0, %s154
    %s172 = sphi 0, %s172
    %s174 = sphi 0, %s172
    %s175 = sphi 0, %s174
    %s189 = sphi 0, %s175
    %s193 = sphi 0, %s193
    %s195 = sphi 0, %s193
    %s196 = sphi 0, %s195
    %s210 = sphi 0, %s196
    %s214 = sphi 0, %s214
    %s216 = sphi 0, %s214
    %s217 = sphi 0, %s216
    %s231 = sphi 0, %s217
    %s235 = sphi 0, %s235
    %s237 = sphi 0, %s235
    %s238 = sphi 0, %s237
    %s252 = sphi 0, %s238
    %s256 = sphi 0, %s256
    %s258 = sphi 0, %s256
    %s259 = sphi 0, %s258
    %s273 = sphi 0, %s259
    %s277 = sphi 0, %s277
    %s279 = sphi 0, %s277
    %s280 = sphi 0, %s279
    %s294 = sphi 0, %s280
    %s298 = sphi 0, %s298
    %s300 = sphi 0, %s298
    %s301 = sphi 0, %s300
    %s315 = sphi 0, %s301
    %s319 = sphi 0, %s319
    %s321 = sphi 0, %s319
    %s322 = sphi 0, %s321
    %s336 = sphi 0, %s322
    %s340 = sphi 0, %s340
    %s342 = sphi 0, %s340
    %s343 = sphi 0, %s342
    %s357 = sphi 0, %s343
    %s361 = sphi 0, %s361
    %s363 = sphi 0, %s361
    %s364 = sphi 0, %s363
    %s378 = sphi 0, %s364
    %s382 = sphi 0, %s382
    %s384 = sphi 0, %s382
    %s385 = sphi 0, %s384
    %s399 = sphi 0, %s385
    %s405 = sphi 0, %s407
    %s408 = sphi 0, %s405
    %s409 = sphi 0, %s408
    %s425 = sphi 0, %s409
  $region4: #{gcn_classifier_forward.1} parent=0 // loop_header_branch
    %26 = sbr.rel (%p24) target = $region8
  $region5: #{gcn_classifier_forward.1} parent=0 // loop_body
    %s28 = ssub.s32 %s23, 1
    %s29 = ssub.s32 %s23, 2
    %s30 = sadd.s32 %s23, 1
    %s31 = ssub.s32 %s23, %s30
    %p32 = scmp.eq.s32.totalorder %s31, 0
    %s34 = sadd.s32 %s33, 1
    %s35 = scalar_select %p32, %s33, %s34
    %p38 = pneg %p32
    %p39 = scmp.eq.s32.totalorder %s23, 1
    %p40 = por %p38, %p39
    %p41 = scmp.ne.s32.totalorder %s33, %s36
    %p42 = scmp.eq.s32.totalorder %s23, 0
    %p43 = por %p41, %p42
    %p44 = scmp.ne.s32.totalorder %s33, %s36
    %p45 = scmp.eq.s32.totalorder %s28, 1
    %p46 = por %p44, %p45
    %p47 = scmp.ne.s32.totalorder %s36, %s37
    %p48 = scmp.eq.s32.totalorder %s28, 0
    %p49 = por %p47, %p48
    %p50 = scmp.ne.s32.totalorder %s36, %s37
    %p51 = scmp.eq.s32.totalorder %s29, 1
    %p52 = por %p50, %p51
    %p54 = scmp.ne.s32.totalorder %s37, %s53
    %p55 = scmp.eq.s32.totalorder %s29, 0
    %p56 = por %p54, %p55
    %s57 = ssub.s32 %s23, %s30
    %p58 = scmp.eq.s32.totalorder %s57, 0
    %s60 = sadd.s32 %s59, 1
    %s61 = scalar_select %p58, %s59, %s60
    %p64 = pneg %p58
    %p65 = scmp.eq.s32.totalorder %s23, 1
    %p66 = por %p64, %p65
    %p67 = scmp.ne.s32.totalorder %s59, %s62
    %p68 = scmp.eq.s32.totalorder %s23, 0
    %p69 = por %p67, %p68
    %p70 = scmp.ne.s32.totalorder %s59, %s62
    %p71 = scmp.eq.s32.totalorder %s28, 1
    %p72 = por %p70, %p71
    %p73 = scmp.ne.s32.totalorder %s62, %s63
    %p74 = scmp.eq.s32.totalorder %s28, 0
    %p75 = por %p73, %p74
    %p76 = scmp.ne.s32.totalorder %s62, %s63
    %p77 = scmp.eq.s32.totalorder %s29, 1
    %p78 = por %p76, %p77
    %p80 = scmp.ne.s32.totalorder %s63, %s79
    %p81 = scmp.eq.s32.totalorder %s29, 0
    %p82 = por %p80, %p81
    %s83 = ssub.s32 %s23, %s30
    %p84 = scmp.eq.s32.totalorder %s83, 0
    %s86 = sadd.s32 %s85, 1
    %s87 = scalar_select %p84, %s85, %s86
    %p90 = pneg %p84
    %p91 = scmp.eq.s32.totalorder %s23, 1
    %p92 = por %p90, %p91
    %p93 = scmp.ne.s32.totalorder %s85, %s88
    %p94 = scmp.eq.s32.totalorder %s23, 0
    %p95 = por %p93, %p94
    %p96 = scmp.ne.s32.totalorder %s85, %s88
    %p97 = scmp.eq.s32.totalorder %s28, 1
    %p98 = por %p96, %p97
    %p99 = scmp.ne.s32.totalorder %s88, %s89
    %p100 = scmp.eq.s32.totalorder %s28, 0
    %p101 = por %p99, %p100
    %p102 = scmp.ne.s32.totalorder %s88, %s89
    %p103 = scmp.eq.s32.totalorder %s29, 1
    %p104 = por %p102, %p103
    %p106 = scmp.ne.s32.totalorder %s89, %s105
    %p107 = scmp.eq.s32.totalorder %s29, 0
    %p108 = por %p106, %p107
    %s110 = sadd.s32 %s109, 1
    %p113 = scmp.eq.s32.totalorder %s23, 1
    %p114 = scmp.ne.s32.totalorder %s109, %s111
    %p115 = scmp.eq.s32.totalorder %s23, 0
    %p116 = por %p114, %p115
    %p117 = scmp.ne.s32.totalorder %s109, %s111
    %p118 = scmp.eq.s32.totalorder %s28, 1
    %p119 = por %p117, %p118
    %p120 = scmp.ne.s32.totalorder %s111, %s112
    %p121 = scmp.eq.s32.totalorder %s28, 0
    %p122 = por %p120, %p121
    %p123 = scmp.ne.s32.totalorder %s111, %s112
    %p124 = scmp.eq.s32.totalorder %s29, 1
    %p125 = por %p123, %p124
    %p127 = scmp.ne.s32.totalorder %s112, %s126
    %p128 = scmp.eq.s32.totalorder %s29, 0
    %p129 = por %p127, %p128
    %s131 = sadd.s32 %s130, 1
    %p134 = scmp.eq.s32.totalorder %s23, 1
    %p135 = scmp.ne.s32.totalorder %s130, %s132
    %p136 = scmp.eq.s32.totalorder %s23, 0
    %p137 = por %p135, %p136
    %p138 = scmp.ne.s32.totalorder %s130, %s132
    %p139 = scmp.eq.s32.totalorder %s28, 1
    %p140 = por %p138, %p139
    %p141 = scmp.ne.s32.totalorder %s132, %s133
    %p142 = scmp.eq.s32.totalorder %s28, 0
    %p143 = por %p141, %p142
    %p144 = scmp.ne.s32.totalorder %s132, %s133
    %p145 = scmp.eq.s32.totalorder %s29, 1
    %p146 = por %p144, %p145
    %p148 = scmp.ne.s32.totalorder %s133, %s147
    %p149 = scmp.eq.s32.totalorder %s29, 0
    %p150 = por %p148, %p149
    %s152 = sadd.s32 %s151, 1
    %p155 = scmp.eq.s32.totalorder %s23, 1
    %p156 = scmp.ne.s32.totalorder %s151, %s153
    %p157 = scmp.eq.s32.totalorder %s23, 0
    %p158 = por %p156, %p157
    %p159 = scmp.ne.s32.totalorder %s151, %s153
    %p160 = scmp.eq.s32.totalorder %s28, 1
    %p161 = por %p159, %p160
    %p162 = scmp.ne.s32.totalorder %s153, %s154
    %p163 = scmp.eq.s32.totalorder %s28, 0
    %p164 = por %p162, %p163
    %p165 = scmp.ne.s32.totalorder %s153, %s154
    %p166 = scmp.eq.s32.totalorder %s29, 1
    %p167 = por %p165, %p166
    %p169 = scmp.ne.s32.totalorder %s154, %s168
    %p170 = scmp.eq.s32.totalorder %s29, 0
    %p171 = por %p169, %p170
    %s173 = sadd.s32 %s172, 1
    %p176 = scmp.eq.s32.totalorder %s23, 1
    %p177 = scmp.ne.s32.totalorder %s172, %s174
    %p178 = scmp.eq.s32.totalorder %s23, 0
    %p179 = por %p177, %p178
    %p180 = scmp.ne.s32.totalorder %s172, %s174
    %p181 = scmp.eq.s32.totalorder %s28, 1
    %p182 = por %p180, %p181
    %p183 = scmp.ne.s32.totalorder %s174, %s175
    %p184 = scmp.eq.s32.totalorder %s28, 0
    %p185 = por %p183, %p184
    %p186 = scmp.ne.s32.totalorder %s174, %s175
    %p187 = scmp.eq.s32.totalorder %s29, 1
    %p188 = por %p186, %p187
    %p190 = scmp.ne.s32.totalorder %s175, %s189
    %p191 = scmp.eq.s32.totalorder %s29, 0
    %p192 = por %p190, %p191
    %s194 = sadd.s32 %s193, 1
    %p197 = scmp.eq.s32.totalorder %s23, 1
    %p198 = scmp.ne.s32.totalorder %s193, %s195
    %p199 = scmp.eq.s32.totalorder %s23, 0
    %p200 = por %p198, %p199
    %p201 = scmp.ne.s32.totalorder %s193, %s195
    %p202 = scmp.eq.s32.totalorder %s28, 1
    %p203 = por %p201, %p202
    %p204 = scmp.ne.s32.totalorder %s195, %s196
    %p205 = scmp.eq.s32.totalorder %s28, 0
    %p206 = por %p204, %p205
    %p207 = scmp.ne.s32.totalorder %s195, %s196
    %p208 = scmp.eq.s32.totalorder %s29, 1
    %p209 = por %p207, %p208
    %p211 = scmp.ne.s32.totalorder %s196, %s210
    %p212 = scmp.eq.s32.totalorder %s29, 0
    %p213 = por %p211, %p212
    %s215 = sadd.s32 %s214, 1
    %p218 = scmp.eq.s32.totalorder %s23, 1
    %p219 = scmp.ne.s32.totalorder %s214, %s216
    %p220 = scmp.eq.s32.totalorder %s23, 0
    %p221 = por %p219, %p220
    %p222 = scmp.ne.s32.totalorder %s214, %s216
    %p223 = scmp.eq.s32.totalorder %s28, 1
    %p224 = por %p222, %p223
    %p225 = scmp.ne.s32.totalorder %s216, %s217
    %p226 = scmp.eq.s32.totalorder %s28, 0
    %p227 = por %p225, %p226
    %p228 = scmp.ne.s32.totalorder %s216, %s217
    %p229 = scmp.eq.s32.totalorder %s29, 1
    %p230 = por %p228, %p229
    %p232 = scmp.ne.s32.totalorder %s217, %s231
    %p233 = scmp.eq.s32.totalorder %s29, 0
    %p234 = por %p232, %p233
    %s236 = sadd.s32 %s235, 1
    %p239 = scmp.eq.s32.totalorder %s23, 1
    %p240 = scmp.ne.s32.totalorder %s235, %s237
    %p241 = scmp.eq.s32.totalorder %s23, 0
    %p242 = por %p240, %p241
    %p243 = scmp.ne.s32.totalorder %s235, %s237
    %p244 = scmp.eq.s32.totalorder %s28, 1
    %p245 = por %p243, %p244
    %p246 = scmp.ne.s32.totalorder %s237, %s238
    %p247 = scmp.eq.s32.totalorder %s28, 0
    %p248 = por %p246, %p247
    %p249 = scmp.ne.s32.totalorder %s237, %s238
    %p250 = scmp.eq.s32.totalorder %s29, 1
    %p251 = por %p249, %p250
    %p253 = scmp.ne.s32.totalorder %s238, %s252
    %p254 = scmp.eq.s32.totalorder %s29, 0
    %p255 = por %p253, %p254
    %s257 = sadd.s32 %s256, 1
    %p260 = scmp.eq.s32.totalorder %s23, 1
    %p261 = scmp.ne.s32.totalorder %s256, %s258
    %p262 = scmp.eq.s32.totalorder %s23, 0
    %p263 = por %p261, %p262
    %p264 = scmp.ne.s32.totalorder %s256, %s258
    %p265 = scmp.eq.s32.totalorder %s28, 1
    %p266 = por %p264, %p265
    %p267 = scmp.ne.s32.totalorder %s258, %s259
    %p268 = scmp.eq.s32.totalorder %s28, 0
    %p269 = por %p267, %p268
    %p270 = scmp.ne.s32.totalorder %s258, %s259
    %p271 = scmp.eq.s32.totalorder %s29, 1
    %p272 = por %p270, %p271
    %p274 = scmp.ne.s32.totalorder %s259, %s273
    %p275 = scmp.eq.s32.totalorder %s29, 0
    %p276 = por %p274, %p275
    %s278 = sadd.s32 %s277, 1
    %p281 = scmp.eq.s32.totalorder %s23, 1
    %p282 = scmp.ne.s32.totalorder %s277, %s279
    %p283 = scmp.eq.s32.totalorder %s23, 0
    %p284 = por %p282, %p283
    %p285 = scmp.ne.s32.totalorder %s277, %s279
    %p286 = scmp.eq.s32.totalorder %s28, 1
    %p287 = por %p285, %p286
    %p288 = scmp.ne.s32.totalorder %s279, %s280
    %p289 = scmp.eq.s32.totalorder %s28, 0
    %p290 = por %p288, %p289
    %p291 = scmp.ne.s32.totalorder %s279, %s280
    %p292 = scmp.eq.s32.totalorder %s29, 1
    %p293 = por %p291, %p292
    %p295 = scmp.ne.s32.totalorder %s280, %s294
    %p296 = scmp.eq.s32.totalorder %s29, 0
    %p297 = por %p295, %p296
    %s299 = sadd.s32 %s298, 1
    %p302 = scmp.eq.s32.totalorder %s23, 1
    %p303 = scmp.ne.s32.totalorder %s298, %s300
    %p304 = scmp.eq.s32.totalorder %s23, 0
    %p305 = por %p303, %p304
    %p306 = scmp.ne.s32.totalorder %s298, %s300
    %p307 = scmp.eq.s32.totalorder %s28, 1
    %p308 = por %p306, %p307
    %p309 = scmp.ne.s32.totalorder %s300, %s301
    %p310 = scmp.eq.s32.totalorder %s28, 0
    %p311 = por %p309, %p310
    %p312 = scmp.ne.s32.totalorder %s300, %s301
    %p313 = scmp.eq.s32.totalorder %s29, 1
    %p314 = por %p312, %p313
    %p316 = scmp.ne.s32.totalorder %s301, %s315
    %p317 = scmp.eq.s32.totalorder %s29, 0
    %p318 = por %p316, %p317
    %s320 = sadd.s32 %s319, 1
    %p323 = scmp.eq.s32.totalorder %s23, 1
    %p324 = scmp.ne.s32.totalorder %s319, %s321
    %p325 = scmp.eq.s32.totalorder %s23, 0
    %p326 = por %p324, %p325
    %p327 = scmp.ne.s32.totalorder %s319, %s321
    %p328 = scmp.eq.s32.totalorder %s28, 1
    %p329 = por %p327, %p328
    %p330 = scmp.ne.s32.totalorder %s321, %s322
    %p331 = scmp.eq.s32.totalorder %s28, 0
    %p332 = por %p330, %p331
    %p333 = scmp.ne.s32.totalorder %s321, %s322
    %p334 = scmp.eq.s32.totalorder %s29, 1
    %p335 = por %p333, %p334
    %p337 = scmp.ne.s32.totalorder %s322, %s336
    %p338 = scmp.eq.s32.totalorder %s29, 0
    %p339 = por %p337, %p338
    %s341 = sadd.s32 %s340, 1
    %p344 = scmp.eq.s32.totalorder %s23, 1
    %p345 = scmp.ne.s32.totalorder %s340, %s342
    %p346 = scmp.eq.s32.totalorder %s23, 0
    %p347 = por %p345, %p346
    %p348 = scmp.ne.s32.totalorder %s340, %s342
    %p349 = scmp.eq.s32.totalorder %s28, 1
    %p350 = por %p348, %p349
    %p351 = scmp.ne.s32.totalorder %s342, %s343
    %p352 = scmp.eq.s32.totalorder %s28, 0
    %p353 = por %p351, %p352
    %p354 = scmp.ne.s32.totalorder %s342, %s343
    %p355 = scmp.eq.s32.totalorder %s29, 1
    %p356 = por %p354, %p355
    %p358 = scmp.ne.s32.totalorder %s343, %s357
    %p359 = scmp.eq.s32.totalorder %s29, 0
    %p360 = por %p358, %p359
    %s362 = sadd.s32 %s361, 1
    %p365 = scmp.eq.s32.totalorder %s23, 1
    %p366 = scmp.ne.s32.totalorder %s361, %s363
    %p367 = scmp.eq.s32.totalorder %s23, 0
    %p368 = por %p366, %p367
    %p369 = scmp.ne.s32.totalorder %s361, %s363
    %p370 = scmp.eq.s32.totalorder %s28, 1
    %p371 = por %p369, %p370
    %p372 = scmp.ne.s32.totalorder %s363, %s364
    %p373 = scmp.eq.s32.totalorder %s28, 0
    %p374 = por %p372, %p373
    %p375 = scmp.ne.s32.totalorder %s363, %s364
    %p376 = scmp.eq.s32.totalorder %s29, 1
    %p377 = por %p375, %p376
    %p379 = scmp.ne.s32.totalorder %s364, %s378
    %p380 = scmp.eq.s32.totalorder %s29, 0
    %p381 = por %p379, %p380
    %s383 = sadd.s32 %s382, 1
    %p386 = scmp.eq.s32.totalorder %s23, 1
    %p387 = scmp.ne.s32.totalorder %s382, %s384
    %p388 = scmp.eq.s32.totalorder %s23, 0
    %p389 = por %p387, %p388
    %p390 = scmp.ne.s32.totalorder %s382, %s384
    %p391 = scmp.eq.s32.totalorder %s28, 1
    %p392 = por %p390, %p391
    %p393 = scmp.ne.s32.totalorder %s384, %s385
    %p394 = scmp.eq.s32.totalorder %s28, 0
    %p395 = por %p393, %p394
    %p396 = scmp.ne.s32.totalorder %s384, %s385
    %p397 = scmp.eq.s32.totalorder %s29, 1
    %p398 = por %p396, %p397
    %p400 = scmp.ne.s32.totalorder %s385, %s399
    %p401 = scmp.eq.s32.totalorder %s29, 0
    %p402 = por %p400, %p401
    %s403 = ssub.s32 %s23, %s30
    %p404 = scmp.eq.s32.totalorder %s403, 0
    %s406 = sadd.s32 %s405, 1
    %s407 = scalar_select %p404, %s405, %s406
    %p410 = pneg %p404
    %p411 = scmp.eq.s32.totalorder %s23, 1
    %p412 = por %p410, %p411
    %p413 = scmp.ne.s32.totalorder %s405, %s408
    %p414 = scmp.eq.s32.totalorder %s23, 0
    %p415 = por %p413, %p414
    %p416 = scmp.ne.s32.totalorder %s405, %s408
    %p417 = scmp.eq.s32.totalorder %s28, 1
    %p418 = por %p416, %p417
    %p419 = scmp.ne.s32.totalorder %s408, %s409
    %p420 = scmp.eq.s32.totalorder %s28, 0
    %p421 = por %p419, %p420
    %p422 = scmp.ne.s32.totalorder %s408, %s409
    %p423 = scmp.eq.s32.totalorder %s29, 1
    %p424 = por %p422, %p423
    %p426 = scmp.ne.s32.totalorder %s409, %s425
    %p427 = scmp.eq.s32.totalorder %s29, 0
    %p428 = por %p426, %p427
    %p429 = scmp.le.s32.totalorder 1, %s23
    %p430 = scmp.lt.s32.totalorder %s23, 3
    %p431 = pnand %p429, %p430
    %p432 = pneg %p431
    // Predicated region
    $region9: #{gcn_classifier_forward.1} parent=5 // pred_check
      _
    $region10: #{gcn_classifier_forward.1} parent=5 // pred_check_branch
      %434 = sbr.rel (%p431) target = $region12
    $region11: #{gcn_classifier_forward.1} parent=5 // pred_region
      %s435 = ssub.s32 %s23, 1
      // Predicated region
      $region13: #{gcn_classifier_forward.1} parent=11 // pred_check
        %p436 = pneg %p122
      $region14: #{gcn_classifier_forward.1} parent=11 // pred_check_branch
        %438 = sbr.rel (%p436) target = $region16
      $region15: #{gcn_classifier_forward.1} parent=11 // pred_region
        _
      $region16: #{gcn_classifier_forward.1} parent=11 // pred_fallthru
        _
      // Predicated region
      $region17: #{gcn_classifier_forward.1} parent=11 // pred_check
        %p439 = pneg %p143
      $region18: #{gcn_classifier_forward.1} parent=11 // pred_check_branch
        %441 = sbr.rel (%p439) target = $region20
      $region19: #{gcn_classifier_forward.1} parent=11 // pred_region
        _
      $region20: #{gcn_classifier_forward.1} parent=11 // pred_fallthru
        _
      // Predicated region
      $region21: #{gcn_classifier_forward.1} parent=11 // pred_check
        %p442 = pneg %p164
      $region22: #{gcn_classifier_forward.1} parent=11 // pred_check_branch
        %444 = sbr.rel (%p442) target = $region24
      $region23: #{gcn_classifier_forward.1} parent=11 // pred_region
        _
      $region24: #{gcn_classifier_forward.1} parent=11 // pred_fallthru
        _
      // Predicated region
      $region25: #{gcn_classifier_forward.1} parent=11 // pred_check
        %p445 = pneg %p185
      $region26: #{gcn_classifier_forward.1} parent=11 // pred_check_branch
        %447 = sbr.rel (%p445) target = $region28
      $region27: #{gcn_classifier_forward.1} parent=11 // pred_region
        _
      $region28: #{gcn_classifier_forward.1} parent=11 // pred_fallthru
        _
      // Predicated region
      $region29: #{gcn_classifier_forward.1} parent=11 // pred_check
        %p448 = pneg %p206
      $region30: #{gcn_classifier_forward.1} parent=11 // pred_check_branch
        %450 = sbr.rel (%p448) target = $region32
      $region31: #{gcn_classifier_forward.1} parent=11 // pred_region
        _
      $region32: #{gcn_classifier_forward.1} parent=11 // pred_fallthru
        _
      // Predicated region
      $region33: #{gcn_classifier_forward.1} parent=11 // pred_check
        %p451 = pneg %p227
      $region34: #{gcn_classifier_forward.1} parent=11 // pred_check_branch
        %453 = sbr.rel (%p451) target = $region36
      $region35: #{gcn_classifier_forward.1} parent=11 // pred_region
        _
      $region36: #{gcn_classifier_forward.1} parent=11 // pred_fallthru
        _
      // Predicated region
      $region37: #{gcn_classifier_forward.1} parent=11 // pred_check
        %p454 = pneg %p248
      $region38: #{gcn_classifier_forward.1} parent=11 // pred_check_branch
        %456 = sbr.rel (%p454) target = $region40
      $region39: #{gcn_classifier_forward.1} parent=11 // pred_region
        _
      $region40: #{gcn_classifier_forward.1} parent=11 // pred_fallthru
        _
      // Predicated region
      $region41: #{gcn_classifier_forward.1} parent=11 // pred_check
        %p457 = pneg %p269
      $region42: #{gcn_classifier_forward.1} parent=11 // pred_check_branch
        %459 = sbr.rel (%p457) target = $region44
      $region43: #{gcn_classifier_forward.1} parent=11 // pred_region
        _
      $region44: #{gcn_classifier_forward.1} parent=11 // pred_fallthru
        _
      // Predicated region
      $region45: #{gcn_classifier_forward.1} parent=11 // pred_check
        %p460 = pneg %p290
      $region46: #{gcn_classifier_forward.1} parent=11 // pred_check_branch
        %462 = sbr.rel (%p460) target = $region48
      $region47: #{gcn_classifier_forward.1} parent=11 // pred_region
        _
      $region48: #{gcn_classifier_forward.1} parent=11 // pred_fallthru
        _
      // Predicated region
      $region49: #{gcn_classifier_forward.1} parent=11 // pred_check
        %p463 = pneg %p311
      $region50: #{gcn_classifier_forward.1} parent=11 // pred_check_branch
        %465 = sbr.rel (%p463) target = $region52
      $region51: #{gcn_classifier_forward.1} parent=11 // pred_region
        _
      $region52: #{gcn_classifier_forward.1} parent=11 // pred_fallthru
        _
      // Predicated region
      $region53: #{gcn_classifier_forward.1} parent=11 // pred_check
        %p466 = pneg %p332
      $region54: #{gcn_classifier_forward.1} parent=11 // pred_check_branch
        %468 = sbr.rel (%p466) target = $region56
      $region55: #{gcn_classifier_forward.1} parent=11 // pred_region
        _
      $region56: #{gcn_classifier_forward.1} parent=11 // pred_fallthru
        _
      // Predicated region
      $region57: #{gcn_classifier_forward.1} parent=11 // pred_check
        %p469 = pneg %p353
      $region58: #{gcn_classifier_forward.1} parent=11 // pred_check_branch
        %471 = sbr.rel (%p469) target = $region60
      $region59: #{gcn_classifier_forward.1} parent=11 // pred_region
        _
      $region60: #{gcn_classifier_forward.1} parent=11 // pred_fallthru
        _
      // Predicated region
      $region61: #{gcn_classifier_forward.1} parent=11 // pred_check
        %p472 = pneg %p374
      $region62: #{gcn_classifier_forward.1} parent=11 // pred_check_branch
        %474 = sbr.rel (%p472) target = $region64
      $region63: #{gcn_classifier_forward.1} parent=11 // pred_region
        _
      $region64: #{gcn_classifier_forward.1} parent=11 // pred_fallthru
        _
      // Predicated region
      $region65: #{gcn_classifier_forward.1} parent=11 // pred_check
        %p475 = pneg %p395
      $region66: #{gcn_classifier_forward.1} parent=11 // pred_check_branch
        %477 = sbr.rel (%p475) target = $region68
      $region67: #{gcn_classifier_forward.1} parent=11 // pred_region
        _
      $region68: #{gcn_classifier_forward.1} parent=11 // pred_fallthru
        _
    $region12: #{gcn_classifier_forward.1} parent=5 // pred_fallthru
      _
    %p478 = scmp.lt.s32.totalorder %s23, 2
    // Predicated region
    $region69: #{gcn_classifier_forward.1} parent=5 // pred_check
      %p479 = pneg %p478
    $region70: #{gcn_classifier_forward.1} parent=5 // pred_check_branch
      %481 = sbr.rel (%p479) target = $region72
    $region71: #{gcn_classifier_forward.1} parent=5 // pred_region
      // Predicated region
      $region73: #{gcn_classifier_forward.1} parent=71 // pred_check
        %p482 = pneg %p43
      $region74: #{gcn_classifier_forward.1} parent=71 // pred_check_branch
        %484 = sbr.rel (%p482) target = $region76
      $region75: #{gcn_classifier_forward.1} parent=71 // pred_region
        %s485 = smul.u32 16, %s23
        %p486 = scmp.lt.s32.totalorder %s485, 31
        %s487 = scalar_select %p486, %s485, 31
        %s488 = smul.addr %s487, 8
        %s489 = scalar_lea.vmem %s0, %s488
        %s490 = smul.u32 16, %s23
      $region76: #{gcn_classifier_forward.1} parent=71 // pred_fallthru
        _
      // Predicated region
      $region77: #{gcn_classifier_forward.1} parent=71 // pred_check
        %p491 = pneg %p69
      $region78: #{gcn_classifier_forward.1} parent=71 // pred_check_branch
        %493 = sbr.rel (%p491) target = $region80
      $region79: #{gcn_classifier_forward.1} parent=71 // pred_region
        %p494 = scmp.lt.s32.totalorder %s23, 1
        %s495 = scalar_select %p494, %s23, 1
        %s496 = smul.addr %s495, 16
        %s497 = smul.addr %s496, 4
        %s498 = scalar_lea.vmem %s1, %s497
      $region80: #{gcn_classifier_forward.1} parent=71 // pred_fallthru
        _
      // Predicated region
      $region81: #{gcn_classifier_forward.1} parent=71 // pred_check
        %p499 = pneg %p95
      $region82: #{gcn_classifier_forward.1} parent=71 // pred_check_branch
        %501 = sbr.rel (%p499) target = $region84
      $region83: #{gcn_classifier_forward.1} parent=71 // pred_region
        %p502 = scmp.lt.s32.totalorder %s23, 1
        %s503 = scalar_select %p502, %s23, 1
        %s504 = smul.addr %s503, 8
        %s505 = scalar_lea.vmem %s2, %s504
      $region84: #{gcn_classifier_forward.1} parent=71 // pred_fallthru
        _
    $region72: #{gcn_classifier_forward.1} parent=5 // pred_fallthru
      _
    %p506 = scmp.le.s32.totalorder 1, %s23
    %p507 = scmp.lt.s32.totalorder %s23, 3
    %p508 = pnand %p506, %p507
    %p509 = pneg %p508
    // Predicated region
    $region85: #{gcn_classifier_forward.1} parent=5 // pred_check
      _
    $region86: #{gcn_classifier_forward.1} parent=5 // pred_check_branch
      %511 = sbr.rel (%p508) target = $region88
    $region87: #{gcn_classifier_forward.1} parent=5 // pred_region
      %s512 = ssub.s32 %s23, 1
      %s513 = smul.u32 16, %s28
      %p514 = scmp.lt.s32.totalorder %s513, 31
      %s515 = scalar_select %p514, %s513, 31
      %s516 = smul.addr %s515, 8
      %s517 = scalar_lea.vmem %s0, %s516
      %p518 = pneg %p49
      %p519 = pneg %p46
      %p520 = scmp.lt.s32.totalorder %s28, 1
      %s521 = scalar_select %p520, %s28, 1
      %s522 = smul.addr %s521, 16
      %s523 = smul.addr %s522, 4
      %s524 = scalar_lea.vmem %s1, %s523
      %p525 = pneg %p75
      %p526 = pneg %p72
      %p527 = scmp.lt.s32.totalorder %s28, 1
      %s528 = scalar_select %p527, %s28, 1
      %s529 = smul.addr %s528, 8
      %s530 = scalar_lea.vmem %s2, %s529
      %p531 = pneg %p101
      %p532 = pneg %p98
      %p533 = pneg %p122
      %p534 = pneg %p119
      %p535 = pneg %p143
      %p536 = pneg %p140
      %p537 = pneg %p164
      %p538 = pneg %p161
      %p539 = pneg %p185
      %p540 = pneg %p182
      %p541 = pneg %p206
      %p542 = pneg %p203
      %p543 = pneg %p227
      %p544 = pneg %p224
      %p545 = pneg %p248
      %p546 = pneg %p245
      %p547 = pneg %p269
      %p548 = pneg %p266
      %p549 = pneg %p290
      %p550 = pneg %p287
      %p551 = pneg %p311
      %p552 = pneg %p308
      %p553 = pneg %p332
      %p554 = pneg %p329
      %p555 = pneg %p353
      %p556 = pneg %p350
      %p557 = pneg %p374
      %p558 = pneg %p371
      %p559 = pneg %p395
      %p560 = pneg %p392
      %p561 = pneg %p421
      %p562 = pneg %p418
      %p563 = scmp.lt.s32.totalorder %s28, 1
      %s564 = scalar_select %p563, %s28, 1
      %s565 = smul.addr %s564, 8
      %s566 = scalar_lea.vmem %s17, %s565
      %s567 = smul.u32 16, %s28
      %p568 = scmp.lt.s32.totalorder %s567, 31
      %s569 = scalar_select %p568, %s567, 31
      %s570 = smul.addr %s569, 8
      %s571 = scalar_lea.vmem %s0, %s570
      %s572 = smul.u32 16, %s28
      %p573 = scmp.lt.s32.totalorder %s28, 1
      %s574 = scalar_select %p573, %s28, 1
      %s575 = smul.addr %s574, 16
      %s576 = smul.addr %s575, 4
      %s577 = scalar_lea.vmem %s1, %s576
      %p578 = scmp.lt.s32.totalorder %s28, 1
      %s579 = scalar_select %p578, %s28, 1
      %s580 = smul.addr %s579, 8
      %s581 = scalar_lea.vmem %s2, %s580
      %p582 = scmp.lt.s32.totalorder %s28, 1
      %s583 = scalar_select %p582, %s28, 1
      %s584 = smul.addr %s583, 8
      %s585 = scalar_lea.vmem %s17, %s584
      %v587 = vld [vmem:[%s577] sm:$0xf]
      %v588 = vld [vmem:[%s577 + $0x4] sm:$0xf]
      %v589 = vld [vmem:[%s577 + $0x8] sm:$0xf]
      %v590 = vld [vmem:[%s577 + $0xc] sm:$0xf]
      %v591 = vld [vmem:[%s577 + $0x10] sm:$0xf]
      %v592 = vld [vmem:[%s577 + $0x14] sm:$0xf]
      %v593 = vld [vmem:[%s577 + $0x18] sm:$0xf]
      %v594 = vld [vmem:[%s577 + $0x1c] sm:$0xf]
      %v595 = vld [vmem:[%s577 + $0x20] sm:$0xf]
      %v596 = vld [vmem:[%s577 + $0x24] sm:$0xf]
      %v597 = vld [vmem:[%s577 + $0x28] sm:$0xf]
      %v598 = vld [vmem:[%s577 + $0x2c] sm:$0xf]
      %v599 = vld [vmem:[%s577 + $0x30] sm:$0xf]
      %v600 = vld [vmem:[%s577 + $0x34] sm:$0xf]
      %v601 = vld [vmem:[%s577 + $0x38] sm:$0xf]
      %v602 = vld [vmem:[%s577 + $0x3c] sm:$0xf]
      %v603 = vld [vmem:[%s571] sm:$0xff]
      %v604 = vld [vmem:[%s571 + $0x8] sm:$0xff]
      %v605 = vld [vmem:[%s571 + $0x10] sm:$0xff]
      %v606 = vld [vmem:[%s571 + $0x18] sm:$0xff]
      %v607 = vld [vmem:[%s571 + $0x20] sm:$0xff]
      %v608 = vld [vmem:[%s571 + $0x28] sm:$0xff]
      %v609 = vld [vmem:[%s571 + $0x30] sm:$0xff]
      %v610 = vld [vmem:[%s571 + $0x38] sm:$0xff]
      %v611 = vld [vmem:[%s571 + $0x40] sm:$0xff]
      %v612 = vld [vmem:[%s571 + $0x48] sm:$0xff]
      %v613 = vld [vmem:[%s571 + $0x50] sm:$0xff]
      %v614 = vld [vmem:[%s571 + $0x58] sm:$0xff]
      %v615 = vld [vmem:[%s571 + $0x60] sm:$0xff]
      %v616 = vld [vmem:[%s571 + $0x68] sm:$0xff]
      %v617 = vld [vmem:[%s571 + $0x70] sm:$0xff]
      %v618 = vld [vmem:[%s571 + $0x78] sm:$0xff]
      %v619 = vpack.c.bf16 %v604, %v603
      %v620 = vpack.c.bf16 %v606, %v605
      %v621 = vpack.c.bf16 %v608, %v607
      %v622 = vpack.c.bf16 %v610, %v609
      %v623 = vpack.c.bf16 %v612, %v611
      %v624 = vpack.c.bf16 %v614, %v613
      %v625 = vpack.c.bf16 %v616, %v615
      %v626 = vpack.c.bf16 %v618, %v617
      %v643 = vunpack.c.l.b16 %v587
      %v644 = vunpack.c.l.b16 %v588
      %v645 = vunpack.c.l.b16 %v589
      %v646 = vunpack.c.l.b16 %v590
      %v647 = vunpack.c.l.b16 %v591
      %v648 = vunpack.c.l.b16 %v592
      %v649 = vunpack.c.l.b16 %v593
      %v650 = vunpack.c.l.b16 %v594
      %v651 = vunpack.c.l.b16 %v595
      %v652 = vunpack.c.l.b16 %v596
      %v653 = vunpack.c.l.b16 %v597
      %v654 = vunpack.c.l.b16 %v598
      %v655 = vunpack.c.l.b16 %v599
      %v656 = vunpack.c.l.b16 %v600
      %v657 = vunpack.c.l.b16 %v601
      %v658 = vunpack.c.l.b16 %v602
      %v659 = vpack.c.b16 %v644, %v643
      %v660 = vpack.c.b16 %v646, %v645
      %v661 = vpack.c.b16 %v648, %v647
      %v662 = vpack.c.b16 %v650, %v649
      %v663 = vpack.c.b16 %v652, %v651
      %v664 = vpack.c.b16 %v654, %v653
      %v665 = vpack.c.b16 %v656, %v655
      %v666 = vpack.c.b16 %v658, %v657
      %675 = vmatprep.subr.bf16.mxu0 0
      %676 = vmatpush1.bf16.msra.mxu0 %v619
      %677 = vmatprep.subr.bf16.mxu0 0
      %678 = vmatpush1.bf16.msra.mxu0 %v620
      %679 = vmatprep.subr.bf16.mxu0 0
      %680 = vmatpush1.bf16.msra.mxu0 %v621
      %681 = vmatprep.subr.bf16.mxu0 0
      %682 = vmatpush1.bf16.msra.mxu0 %v622
      %683 = vmatprep.subr.bf16.mxu0 0
      %684 = vmatpush1.bf16.msra.mxu0 %v623
      %685 = vmatprep.subr.bf16.mxu0 0
      %686 = vmatpush1.bf16.msra.mxu0 %v624
      %687 = vmatprep.subr.bf16.mxu0 0
      %688 = vmatpush1.bf16.msra.mxu0 %v625
      %689 = vmatprep.subr.bf16.mxu0 0
      %690 = vmatpush1.bf16.msra.mxu0 %v626
      %691 = vmatprep.subr.bf16.mxu0 0
      %692 = vmatpush1.bf16.msra.mxu0 0
      %693 = vmatprep.subr.bf16.mxu0 0
      %694 = vmatpush1.bf16.msra.mxu0 0
      %695 = vmatprep.subr.bf16.mxu0 0
      %696 = vmatpush1.bf16.msra.mxu0 0
      %697 = vmatprep.subr.bf16.mxu0 0
      %698 = vmatpush1.bf16.msra.mxu0 0
      %699 = vmatprep.subr.bf16.mxu0 0
      %700 = vmatpush1.bf16.msra.mxu0 0
      %701 = vmatprep.subr.bf16.mxu0 0
      %702 = vmatpush1.bf16.msra.mxu0 0
      %703 = vmatprep.subr.bf16.mxu0 0
      %704 = vmatpush1.bf16.msra.mxu0 0
      %705 = vmatprep.subr.bf16.mxu0 0
      %706 = vmatpush1.bf16.msra.mxu0 0
      %707 = vmatprep.mubr.bf16.mxu0 0
      %708 = vmatmul.mubr.bf16.gmra.mrb[0].mxu0 %v659
      %v709 = vpop.f32.mrb[0].mxu0
      %v710 = vadd.f32 0.0, %v709
      %v711 = vpop.f32.mrb[0].mxu0
      %v712 = vpop.f32.mrb[0].mxu0
      %v713 = vadd.f32 0.0, %v712
      %v714 = vpop.f32.mrb[0].mxu0
      %715 = vmatprep.mubr.bf16.mxu0 0
      %716 = vmatmul.mubr.bf16.gmra.mrb[0].mxu0 %v660
      %v717 = vpop.f32.mrb[0].mxu0
      %v718 = vadd.f32 0.0, %v717
      %v719 = vpop.f32.mrb[0].mxu0
      %v720 = vpop.f32.mrb[0].mxu0
      %v721 = vadd.f32 0.0, %v720
      %v722 = vpop.f32.mrb[0].mxu0
      %723 = vmatprep.mubr.bf16.mxu0 0
      %724 = vmatmul.mubr.bf16.gmra.mrb[0].mxu0 %v661
      %v725 = vpop.f32.mrb[0].mxu0
      %v726 = vadd.f32 0.0, %v725
      %v727 = vpop.f32.mrb[0].mxu0
      %v728 = vpop.f32.mrb[0].mxu0
      %v729 = vadd.f32 0.0, %v728
      %v730 = vpop.f32.mrb[0].mxu0
      %731 = vmatprep.mubr.bf16.mxu0 0
      %732 = vmatmul.mubr.bf16.gmra.mrb[0].mxu0 %v662
      %v733 = vpop.f32.mrb[0].mxu0
      %v734 = vadd.f32 0.0, %v733
      %v735 = vpop.f32.mrb[0].mxu0
      %v736 = vpop.f32.mrb[0].mxu0
      %v737 = vadd.f32 0.0, %v736
      %v738 = vpop.f32.mrb[0].mxu0
      %739 = vmatprep.mubr.bf16.mxu0 0
      %740 = vmatmul.mubr.bf16.gmra.mrb[0].mxu0 %v663
      %v741 = vpop.f32.mrb[0].mxu0
      %v742 = vadd.f32 0.0, %v741
      %v743 = vpop.f32.mrb[0].mxu0
      %v744 = vpop.f32.mrb[0].mxu0
      %v745 = vadd.f32 0.0, %v744
      %v746 = vpop.f32.mrb[0].mxu0
      %747 = vmatprep.mubr.bf16.mxu0 0
      %748 = vmatmul.mubr.bf16.gmra.mrb[0].mxu0 %v664
      %v749 = vpop.f32.mrb[0].mxu0
      %v750 = vadd.f32 0.0, %v749
      %v751 = vpop.f32.mrb[0].mxu0
      %v752 = vpop.f32.mrb[0].mxu0
      %v753 = vadd.f32 0.0, %v752
      %v754 = vpop.f32.mrb[0].mxu0
      %755 = vmatprep.mubr.bf16.mxu0 0
      %756 = vmatmul.mubr.bf16.gmra.mrb[0].mxu0 %v665
      %v757 = vpop.f32.mrb[0].mxu0
      %v758 = vadd.f32 0.0, %v757
      %v759 = vpop.f32.mrb[0].mxu0
      %v760 = vpop.f32.mrb[0].mxu0
      %v761 = vadd.f32 0.0, %v760
      %v762 = vpop.f32.mrb[0].mxu0
      %763 = vmatprep.mubr.bf16.mxu0 0
      %764 = vmatmul.mubr.bf16.gmra.mrb[0].mxu0 %v666
      %v765 = vpop.f32.mrb[0].mxu0
      %v766 = vadd.f32 0.0, %v765
      %v767 = vpop.f32.mrb[0].mxu0
      %v768 = vpop.f32.mrb[0].mxu0
      %v769 = vadd.f32 0.0, %v768
      %v770 = vpop.f32.mrb[0].mxu0
      %771 = vdwg.mxu0
      %vm772 = vcmask 523264
      %773 = vst.msk [vmem:[#allocation2] sm:$0xff] %vm772, %v603
      %774 = vst.msk [vmem:[#allocation2 + $0x8] sm:$0xff] %vm772, %v604
      %775 = vst.msk [vmem:[#allocation2 + $0x10] sm:$0xff] %vm772, %v605
      %776 = vst.msk [vmem:[#allocation2 + $0x18] sm:$0xff] %vm772, %v606
      %777 = vst.msk [vmem:[#allocation2 + $0x20] sm:$0xff] %vm772, %v607
      %778 = vst.msk [vmem:[#allocation2 + $0x28] sm:$0xff] %vm772, %v608
      %779 = vst.msk [vmem:[#allocation2 + $0x30] sm:$0xff] %vm772, %v609
      %780 = vst.msk [vmem:[#allocation2 + $0x38] sm:$0xff] %vm772, %v610
      %781 = vst.msk [vmem:[#allocation2 + $0x40] sm:$0xff] %vm772, %v611
      %782 = vst.msk [vmem:[#allocation2 + $0x48] sm:$0xff] %vm772, %v612
      %783 = vst.msk [vmem:[#allocation2 + $0x50] sm:$0xff] %vm772, %v613
      %784 = vst.msk [vmem:[#allocation2 + $0x58] sm:$0xff] %vm772, %v614
      %785 = vst.msk [vmem:[#allocation2 + $0x60] sm:$0xff] %vm772, %v615
      %786 = vst.msk [vmem:[#allocation2 + $0x68] sm:$0xff] %vm772, %v616
      %787 = vst.msk [vmem:[#allocation2 + $0x70] sm:$0xff] %vm772, %v617
      %788 = vst.msk [vmem:[#allocation2 + $0x78] sm:$0xff] %vm772, %v618
      %805 = vrot.lane.b32.xlu0 %v710, 64
      %v806 = vpop.permute.xlu0 %805
      %807 = vrot.lane.b32.xlu0 %v713, 64
      %v808 = vpop.permute.xlu0 %807
      %809 = vrot.lane.b32.xlu0 %v718, 64
      %v810 = vpop.permute.xlu0 %809
      %811 = vrot.lane.b32.xlu0 %v721, 64
      %v812 = vpop.permute.xlu0 %811
      %813 = vrot.lane.b32.xlu0 %v726, 64
      %v814 = vpop.permute.xlu0 %813
      %815 = vrot.lane.b32.xlu0 %v729, 64
      %v816 = vpop.permute.xlu0 %815
      %817 = vrot.lane.b32.xlu0 %v734, 64
      %v818 = vpop.permute.xlu0 %817
      %819 = vrot.lane.b32.xlu0 %v737, 64
      %v820 = vpop.permute.xlu0 %819
      %821 = vrot.lane.b32.xlu0 %v742, 64
      %v822 = vpop.permute.xlu0 %821
      %823 = vrot.lane.b32.xlu0 %v745, 64
      %v824 = vpop.permute.xlu0 %823
      %825 = vrot.lane.b32.xlu0 %v750, 64
      %v826 = vpop.permute.xlu0 %825
      %827 = vrot.lane.b32.xlu0 %v753, 64
      %v828 = vpop.permute.xlu0 %827
      %829 = vrot.lane.b32.xlu0 %v758, 64
      %v830 = vpop.permute.xlu0 %829
      %831 = vrot.lane.b32.xlu0 %v761, 64
      %v832 = vpop.permute.xlu0 %831
      %833 = vrot.lane.b32.xlu0 %v766, 64
      %v834 = vpop.permute.xlu0 %833
      %835 = vrot.lane.b32.xlu0 %v769, 64
      %v836 = vpop.permute.xlu0 %835
      %vm853 = vcmask 1048064
      %854 = vst.msk [vmem:[#allocation2] sm:$0xff] %vm853, %v806
      %855 = vst.msk [vmem:[#allocation2 + $0x8] sm:$0xff] %vm853, %v808
      %856 = vst.msk [vmem:[#allocation2 + $0x10] sm:$0xff] %vm853, %v810
      %857 = vst.msk [vmem:[#allocation2 + $0x18] sm:$0xff] %vm853, %v812
      %858 = vst.msk [vmem:[#allocation2 + $0x20] sm:$0xff] %vm853, %v814
      %859 = vst.msk [vmem:[#allocation2 + $0x28] sm:$0xff] %vm853, %v816
      %860 = vst.msk [vmem:[#allocation2 + $0x30] sm:$0xff] %vm853, %v818
      %861 = vst.msk [vmem:[#allocation2 + $0x38] sm:$0xff] %vm853, %v820
      %862 = vst.msk [vmem:[#allocation2 + $0x40] sm:$0xff] %vm853, %v822
      %863 = vst.msk [vmem:[#allocation2 + $0x48] sm:$0xff] %vm853, %v824
      %864 = vst.msk [vmem:[#allocation2 + $0x50] sm:$0xff] %vm853, %v826
      %865 = vst.msk [vmem:[#allocation2 + $0x58] sm:$0xff] %vm853, %v828
      %866 = vst.msk [vmem:[#allocation2 + $0x60] sm:$0xff] %vm853, %v830
      %867 = vst.msk [vmem:[#allocation2 + $0x68] sm:$0xff] %vm853, %v832
      %868 = vst.msk [vmem:[#allocation2 + $0x70] sm:$0xff] %vm853, %v834
      %869 = vst.msk [vmem:[#allocation2 + $0x78] sm:$0xff] %vm853, %v836
      %v870 = vld [vmem:[#allocation2] sm:$0xff]
      %v871 = vld [vmem:[#allocation2 + $0x8] sm:$0xff]
      %v872 = vld [vmem:[#allocation2 + $0x10] sm:$0xff]
      %v873 = vld [vmem:[#allocation2 + $0x18] sm:$0xff]
      %v874 = vld [vmem:[#allocation2 + $0x20] sm:$0xff]
      %v875 = vld [vmem:[#allocation2 + $0x28] sm:$0xff]
      %v876 = vld [vmem:[#allocation2 + $0x30] sm:$0xff]
      %v877 = vld [vmem:[#allocation2 + $0x38] sm:$0xff]
      %v878 = vld [vmem:[#allocation2 + $0x40] sm:$0xff]
      %v879 = vld [vmem:[#allocation2 + $0x48] sm:$0xff]
      %v880 = vld [vmem:[#allocation2 + $0x50] sm:$0xff]
      %v881 = vld [vmem:[#allocation2 + $0x58] sm:$0xff]
      %v882 = vld [vmem:[#allocation2 + $0x60] sm:$0xff]
      %v883 = vld [vmem:[#allocation2 + $0x68] sm:$0xff]
      %v884 = vld [vmem:[#allocation2 + $0x70] sm:$0xff]
      %v885 = vld [vmem:[#allocation2 + $0x78] sm:$0xff]
      %v886 = vld [vmem:[%s3] sm:$0xff]
      %v887 = vld [vmem:[%s3 + $0x8] sm:$0xff]
      %v888 = vld [vmem:[%s3 + $0x10] sm:$0xff]
      %v889 = vld [vmem:[%s3 + $0x18] sm:$0xff]
      %v890 = vld [vmem:[%s3 + $0x20] sm:$0xff]
      %v891 = vld [vmem:[%s3 + $0x28] sm:$0xff]
      %v892 = vld [vmem:[%s3 + $0x30] sm:$0xff]
      %v893 = vld [vmem:[%s3 + $0x38] sm:$0xff]
      %v894 = vld [vmem:[%s3 + $0x40] sm:$0xff]
      %v895 = vld [vmem:[%s3 + $0x48] sm:$0xff]
      %v896 = vld [vmem:[%s3 + $0x50] sm:$0xff]
      %v897 = vld [vmem:[%s3 + $0x58] sm:$0xff]
      %v898 = vld [vmem:[%s3 + $0x60] sm:$0xff]
      %v899 = vld [vmem:[%s3 + $0x68] sm:$0xff]
      %v900 = vld [vmem:[%s3 + $0x70] sm:$0xff]
      %v901 = vld [vmem:[%s3 + $0x78] sm:$0xff]
      %v902 = vld [vmem:[%s4] sm:$0x1]
      %v904 = vlaneseq
      %v905 = vshrl.u32 %v904, 7
      %v906 = vsub.s32 0, %v905
      %v907 = vrot.slane %v902, %v906
      %909 = vmatprep.subr.mxu0 0.0
      %910 = vmatpush1.msra.mxu0 %v886
      %911 = vmatprep.subr.mxu0 0.0
      %912 = vmatpush1.msra.mxu0 %v887
      %913 = vmatprep.subr.mxu0 0.0
      %914 = vmatpush1.msra.mxu0 %v888
      %915 = vmatprep.subr.mxu0 0.0
      %916 = vmatpush1.msra.mxu0 %v889
      %917 = vmatprep.subr.mxu0 0.0
      %918 = vmatpush1.msra.mxu0 %v890
      %919 = vmatprep.subr.mxu0 0.0
      %920 = vmatpush1.msra.mxu0 %v891
      %921 = vmatprep.subr.mxu0 0.0
      %922 = vmatpush1.msra.mxu0 %v892
      %923 = vmatprep.subr.mxu0 0.0
      %924 = vmatpush1.msra.mxu0 %v893
      %925 = vmatprep.subr.mxu0 0.0
      %926 = vmatpush1.msra.mxu0 %v894
      %927 = vmatprep.subr.mxu0 0.0
      %928 = vmatpush1.msra.mxu0 %v895
      %929 = vmatprep.subr.mxu0 0.0
      %930 = vmatpush1.msra.mxu0 %v896
      %931 = vmatprep.subr.mxu0 0.0
      %932 = vmatpush1.msra.mxu0 %v897
      %933 = vmatprep.subr.mxu0 0.0
      %934 = vmatpush1.msra.mxu0 %v898
      %935 = vmatprep.subr.mxu0 0.0
      %936 = vmatpush1.msra.mxu0 %v899
      %937 = vmatprep.subr.mxu0 0.0
      %938 = vmatpush1.msra.mxu0 %v900
      %939 = vmatprep.subr.mxu0 0.0
      %940 = vmatpush1.msra.mxu0 %v901
      %941 = vmatprep.subr.mxu0 0.0
      %942 = vmatpush1.msra.mxu0 0.0
      %943 = vmatprep.subr.mxu0 0.0
      %944 = vmatpush1.msra.mxu0 0.0
      %945 = vmatprep.subr.mxu0 0.0
      %946 = vmatpush1.msra.mxu0 0.0
      %947 = vmatprep.subr.mxu0 0.0
      %948 = vmatpush1.msra.mxu0 0.0
      %949 = vmatprep.subr.mxu0 0.0
      %950 = vmatpush1.msra.mxu0 0.0
      %951 = vmatprep.subr.mxu0 0.0
      %952 = vmatpush1.msra.mxu0 0.0
      %953 = vmatprep.subr.mxu0 0.0
      %954 = vmatpush1.msra.mxu0 0.0
      %955 = vmatprep.subr.mxu0 0.0
      %956 = vmatpush1.msra.mxu0 0.0
      %957 = vmatprep.subr.mxu0 0.0
      %958 = vmatpush1.msra.mxu0 0.0
      %959 = vmatprep.subr.mxu0 0.0
      %960 = vmatpush1.msra.mxu0 0.0
      %961 = vmatprep.subr.mxu0 0.0
      %962 = vmatpush1.msra.mxu0 0.0
      %963 = vmatprep.subr.mxu0 0.0
      %964 = vmatpush1.msra.mxu0 0.0
      %965 = vmatprep.subr.mxu0 0.0
      %966 = vmatpush1.msra.mxu0 0.0
      %967 = vmatprep.subr.mxu0 0.0
      %968 = vmatpush1.msra.mxu0 0.0
      %969 = vmatprep.subr.mxu0 0.0
      %970 = vmatpush1.msra.mxu0 0.0
      %971 = vmatprep.subr.mxu0 0.0
      %972 = vmatpush1.msra.mxu0 0.0
      %973 = vmatprep.mubr.f32.mxu0 0.0
      %974 = vmatmul.mubr.f32.gmra.mrb[0].mxu0 %v870
      %v975 = vpop.f32.mrb[0].mxu0
      %v976 = vadd.f32 %v907, %v975
      %v977 = vpop.f32.mrb[0].mxu0
      %978 = vmatprep.mubr.f32.mxu0 0.0
      %979 = vmatmul.mubr.f32.gmra.mrb[0].mxu0 %v871
      %v980 = vpop.f32.mrb[0].mxu0
      %v981 = vadd.f32 %v907, %v980
      %v982 = vpop.f32.mrb[0].mxu0
      %983 = vmatprep.mubr.f32.mxu0 0.0
      %984 = vmatmul.mubr.f32.gmra.mrb[0].mxu0 %v872
      %v985 = vpop.f32.mrb[0].mxu0
      %v986 = vadd.f32 %v907, %v985
      %v987 = vpop.f32.mrb[0].mxu0
      %988 = vmatprep.mubr.f32.mxu0 0.0
      %989 = vmatmul.mubr.f32.gmra.mrb[0].mxu0 %v873
      %v990 = vpop.f32.mrb[0].mxu0
      %v991 = vadd.f32 %v907, %v990
      %v992 = vpop.f32.mrb[0].mxu0
      %993 = vmatprep.mubr.f32.mxu0 0.0
      %994 = vmatmul.mubr.f32.gmra.mrb[0].mxu0 %v874
      %v995 = vpop.f32.mrb[0].mxu0
      %v996 = vadd.f32 %v907, %v995
      %v997 = vpop.f32.mrb[0].mxu0
      %998 = vmatprep.mubr.f32.mxu0 0.0
      %999 = vmatmul.mubr.f32.gmra.mrb[0].mxu0 %v875
      %v1000 = vpop.f32.mrb[0].mxu0
      %v1001 = vadd.f32 %v907, %v1000
      %v1002 = vpop.f32.mrb[0].mxu0
      %1003 = vmatprep.mubr.f32.mxu0 0.0
      %1004 = vmatmul.mubr.f32.gmra.mrb[0].mxu0 %v876
      %v1005 = vpop.f32.mrb[0].mxu0
      %v1006 = vadd.f32 %v907, %v1005
      %v1007 = vpop.f32.mrb[0].mxu0
      %1008 = vmatprep.mubr.f32.mxu0 0.0
      %1009 = vmatmul.mubr.f32.gmra.mrb[0].mxu0 %v877
      %v1010 = vpop.f32.mrb[0].mxu0
      %v1011 = vadd.f32 %v907, %v1010
      %v1012 = vpop.f32.mrb[0].mxu0
      %1013 = vmatprep.mubr.f32.mxu0 0.0
      %1014 = vmatmul.mubr.f32.gmra.mrb[0].mxu0 %v878
      %v1015 = vpop.f32.mrb[0].mxu0
      %v1016 = vadd.f32 %v907, %v1015
      %v1017 = vpop.f32.mrb[0].mxu0
      %1018 = vmatprep.mubr.f32.mxu0 0.0
      %1019 = vmatmul.mubr.f32.gmra.mrb[0].mxu0 %v879
      %v1020 = vpop.f32.mrb[0].mxu0
      %v1021 = vadd.f32 %v907, %v1020
      %v1022 = vpop.f32.mrb[0].mxu0
      %1023 = vmatprep.mubr.f32.mxu0 0.0
      %1024 = vmatmul.mubr.f32.gmra.mrb[0].mxu0 %v880
      %v1025 = vpop.f32.mrb[0].mxu0
      %v1026 = vadd.f32 %v907, %v1025
      %v1027 = vpop.f32.mrb[0].mxu0
      %1028 = vmatprep.mubr.f32.mxu0 0.0
      %1029 = vmatmul.mubr.f32.gmra.mrb[0].mxu0 %v881
      %v1030 = vpop.f32.mrb[0].mxu0
      %v1031 = vadd.f32 %v907, %v1030
      %v1032 = vpop.f32.mrb[0].mxu0
      %1033 = vmatprep.mubr.f32.mxu0 0.0
      %1034 = vmatmul.mubr.f32.gmra.mrb[0].mxu0 %v882
      %v1035 = vpop.f32.mrb[0].mxu0
      %v1036 = vadd.f32 %v907, %v1035
      %v1037 = vpop.f32.mrb[0].mxu0
      %1038 = vmatprep.mubr.f32.mxu0 0.0
      %1039 = vmatmul.mubr.f32.gmra.mrb[0].mxu0 %v883
      %v1040 = vpop.f32.mrb[0].mxu0
      %v1041 = vadd.f32 %v907, %v1040
      %v1042 = vpop.f32.mrb[0].mxu0
      %1043 = vmatprep.mubr.f32.mxu0 0.0
      %1044 = vmatmul.mubr.f32.gmra.mrb[0].mxu0 %v884
      %v1045 = vpop.f32.mrb[0].mxu0
      %v1046 = vadd.f32 %v907, %v1045
      %v1047 = vpop.f32.mrb[0].mxu0
      %1048 = vmatprep.mubr.f32.mxu0 0.0
      %1049 = vmatmul.mubr.f32.gmra.mrb[0].mxu0 %v885
      %v1050 = vpop.f32.mrb[0].mxu0
      %v1051 = vadd.f32 %v907, %v1050
      %v1052 = vpop.f32.mrb[0].mxu0
      %1053 = vdwg.mxu0
      %v1054 = vmax.f32 %v976, 0.0
      %v1055 = vmax.f32 %v981, 0.0
      %v1056 = vmax.f32 %v986, 0.0
      %v1057 = vmax.f32 %v991, 0.0
      %v1058 = vmax.f32 %v996, 0.0
      %v1059 = vmax.f32 %v1001, 0.0
      %v1060 = vmax.f32 %v1006, 0.0
      %v1061 = vmax.f32 %v1011, 0.0
      %v1062 = vmax.f32 %v1016, 0.0
      %v1063 = vmax.f32 %v1021, 0.0
      %v1064 = vmax.f32 %v1026, 0.0
      %v1065 = vmax.f32 %v1031, 0.0
      %v1066 = vmax.f32 %v1036, 0.0
      %v1067 = vmax.f32 %v1041, 0.0
      %v1068 = vmax.f32 %v1046, 0.0
      %v1069 = vmax.f32 %v1051, 0.0
      %v1070 = vpack.c.bf16 %v1055, %v1054
      %v1071 = vpack.c.bf16 %v1057, %v1056
      %v1072 = vpack.c.bf16 %v1059, %v1058
      %v1073 = vpack.c.bf16 %v1061, %v1060
      %v1074 = vpack.c.bf16 %v1063, %v1062
      %v1075 = vpack.c.bf16 %v1065, %v1064
      %v1076 = vpack.c.bf16 %v1067, %v1066
      %v1077 = vpack.c.bf16 %v1069, %v1068
      %1078 = vmatprep.subr.bf16.mxu0 0
      %1079 = vmatpush1.bf16.msra.mxu0 %v1070
      %1080 = vmatprep.subr.bf16.mxu0 0
      %1081 = vmatpush1.bf16.msra.mxu0 %v1071
      %1082 = vmatprep.subr.bf16.mxu0 0
      %1083 = vmatpush1.bf16.msra.mxu0 %v1072
      %1084 = vmatprep.subr.bf16.mxu0 0
      %1085 = vmatpush1.bf16.msra.mxu0 %v1073
      %1086 = vmatprep.subr.bf16.mxu0 0
      %1087 = vmatpush1.bf16.msra.mxu0 %v1074
      %1088 = vmatprep.subr.bf16.mxu0 0
      %1089 = vmatpush1.bf16.msra.mxu0 %v1075
      %1090 = vmatprep.subr.bf16.mxu0 0
      %1091 = vmatpush1.bf16.msra.mxu0 %v1076
      %1092 = vmatprep.subr.bf16.mxu0 0
      %1093 = vmatpush1.bf16.msra.mxu0 %v1077
      %1094 = vmatprep.subr.bf16.mxu0 0
      %1095 = vmatpush1.bf16.msra.mxu0 0
      %1096 = vmatprep.subr.bf16.mxu0 0
      %1097 = vmatpush1.bf16.msra.mxu0 0
      %1098 = vmatprep.subr.bf16.mxu0 0
      %1099 = vmatpush1.bf16.msra.mxu0 0
      %1100 = vmatprep.subr.bf16.mxu0 0
      %1101 = vmatpush1.bf16.msra.mxu0 0
      %1102 = vmatprep.subr.bf16.mxu0 0
      %1103 = vmatpush1.bf16.msra.mxu0 0
      %1104 = vmatprep.subr.bf16.mxu0 0
      %1105 = vmatpush1.bf16.msra.mxu0 0
      %1106 = vmatprep.subr.bf16.mxu0 0
      %1107 = vmatpush1.bf16.msra.mxu0 0
      %1108 = vmatprep.subr.bf16.mxu0 0
      %1109 = vmatpush1.bf16.msra.mxu0 0
      %1110 = vmatprep.mubr.bf16.mxu0 0
      %1111 = vmatmul.mubr.bf16.gmra.mrb[0].mxu0 %v659
      %v1112 = vpop.f32.mrb[0].mxu0
      %v1113 = vadd.f32 0.0, %v1112
      %v1114 = vpop.f32.mrb[0].mxu0
      %v1115 = vpop.f32.mrb[0].mxu0
      %v1116 = vadd.f32 0.0, %v1115
      %v1117 = vpop.f32.mrb[0].mxu0
      %1118 = vmatprep.mubr.bf16.mxu0 0
      %1119 = vmatmul.mubr.bf16.gmra.mrb[0].mxu0 %v660
      %v1120 = vpop.f32.mrb[0].mxu0
      %v1121 = vadd.f32 0.0, %v1120
      %v1122 = vpop.f32.mrb[0].mxu0
      %v1123 = vpop.f32.mrb[0].mxu0
      %v1124 = vadd.f32 0.0, %v1123
      %v1125 = vpop.f32.mrb[0].mxu0
      %1126 = vmatprep.mubr.bf16.mxu0 0
      %1127 = vmatmul.mubr.bf16.gmra.mrb[0].mxu0 %v661
      %v1128 = vpop.f32.mrb[0].mxu0
      %v1129 = vadd.f32 0.0, %v1128
      %v1130 = vpop.f32.mrb[0].mxu0
      %v1131 = vpop.f32.mrb[0].mxu0
      %v1132 = vadd.f32 0.0, %v1131
      %v1133 = vpop.f32.mrb[0].mxu0
      %1134 = vmatprep.mubr.bf16.mxu0 0
      %1135 = vmatmul.mubr.bf16.gmra.mrb[0].mxu0 %v662
      %v1136 = vpop.f32.mrb[0].mxu0
      %v1137 = vadd.f32 0.0, %v1136
      %v1138 = vpop.f32.mrb[0].mxu0
      %v1139 = vpop.f32.mrb[0].mxu0
      %v1140 = vadd.f32 0.0, %v1139
      %v1141 = vpop.f32.mrb[0].mxu0
      %1142 = vmatprep.mubr.bf16.mxu0 0
      %1143 = vmatmul.mubr.bf16.gmra.mrb[0].mxu0 %v663
      %v1144 = vpop.f32.mrb[0].mxu0
      %v1145 = vadd.f32 0.0, %v1144
      %v1146 = vpop.f32.mrb[0].mxu0
      %v1147 = vpop.f32.mrb[0].mxu0
      %v1148 = vadd.f32 0.0, %v1147
      %v1149 = vpop.f32.mrb[0].mxu0
      %1150 = vmatprep.mubr.bf16.mxu0 0
      %1151 = vmatmul.mubr.bf16.gmra.mrb[0].mxu0 %v664
      %v1152 = vpop.f32.mrb[0].mxu0
      %v1153 = vadd.f32 0.0, %v1152
      %v1154 = vpop.f32.mrb[0].mxu0
      %v1155 = vpop.f32.mrb[0].mxu0
      %v1156 = vadd.f32 0.0, %v1155
      %v1157 = vpop.f32.mrb[0].mxu0
      %1158 = vmatprep.mubr.bf16.mxu0 0
      %1159 = vmatmul.mubr.bf16.gmra.mrb[0].mxu0 %v665
      %v1160 = vpop.f32.mrb[0].mxu0
      %v1161 = vadd.f32 0.0, %v1160
      %v1162 = vpop.f32.mrb[0].mxu0
      %v1163 = vpop.f32.mrb[0].mxu0
      %v1164 = vadd.f32 0.0, %v1163
      %v1165 = vpop.f32.mrb[0].mxu0
      %1166 = vmatprep.mubr.bf16.mxu0 0
      %1167 = vmatmul.mubr.bf16.gmra.mrb[0].mxu0 %v666
      %v1168 = vpop.f32.mrb[0].mxu0
      %v1169 = vadd.f32 0.0, %v1168
      %v1170 = vpop.f32.mrb[0].mxu0
      %v1171 = vpop.f32.mrb[0].mxu0
      %v1172 = vadd.f32 0.0, %v1171
      %v1173 = vpop.f32.mrb[0].mxu0
      %1174 = vdwg.mxu0
      %1175 = vst.msk [vmem:[#allocation2] sm:$0xff] %vm772, %v1054
      %1176 = vst.msk [vmem:[#allocation2 + $0x8] sm:$0xff] %vm772, %v1055
      %1177 = vst.msk [vmem:[#allocation2 + $0x10] sm:$0xff] %vm772, %v1056
      %1178 = vst.msk [vmem:[#allocation2 + $0x18] sm:$0xff] %vm772, %v1057
      %1179 = vst.msk [vmem:[#allocation2 + $0x20] sm:$0xff] %vm772, %v1058
      %1180 = vst.msk [vmem:[#allocation2 + $0x28] sm:$0xff] %vm772, %v1059
      %1181 = vst.msk [vmem:[#allocation2 + $0x30] sm:$0xff] %vm772, %v1060
      %1182 = vst.msk [vmem:[#allocation2 + $0x38] sm:$0xff] %vm772, %v1061
      %1183 = vst.msk [vmem:[#allocation2 + $0x40] sm:$0xff] %vm772, %v1062
      %1184 = vst.msk [vmem:[#allocation2 + $0x48] sm:$0xff] %vm772, %v1063
      %1185 = vst.msk [vmem:[#allocation2 + $0x50] sm:$0xff] %vm772, %v1064
      %1186 = vst.msk [vmem:[#allocation2 + $0x58] sm:$0xff] %vm772, %v1065
      %1187 = vst.msk [vmem:[#allocation2 + $0x60] sm:$0xff] %vm772, %v1066
      %1188 = vst.msk [vmem:[#allocation2 + $0x68] sm:$0xff] %vm772, %v1067
      %1189 = vst.msk [vmem:[#allocation2 + $0x70] sm:$0xff] %vm772, %v1068
      %1190 = vst.msk [vmem:[#allocation2 + $0x78] sm:$0xff] %vm772, %v1069
      %1207 = vrot.lane.b32.xlu0 %v1113, 64
      %v1208 = vpop.permute.xlu0 %1207
      %1209 = vrot.lane.b32.xlu0 %v1116, 64
      %v1210 = vpop.permute.xlu0 %1209
      %1211 = vrot.lane.b32.xlu0 %v1121, 64
      %v1212 = vpop.permute.xlu0 %1211
      %1213 = vrot.lane.b32.xlu0 %v1124, 64
      %v1214 = vpop.permute.xlu0 %1213
      %1215 = vrot.lane.b32.xlu0 %v1129, 64
      %v1216 = vpop.permute.xlu0 %1215
      %1217 = vrot.lane.b32.xlu0 %v1132, 64
      %v1218 = vpop.permute.xlu0 %1217
      %1219 = vrot.lane.b32.xlu0 %v1137, 64
      %v1220 = vpop.permute.xlu0 %1219
      %1221 = vrot.lane.b32.xlu0 %v1140, 64
      %v1222 = vpop.permute.xlu0 %1221
      %1223 = vrot.lane.b32.xlu0 %v1145, 64
      %v1224 = vpop.permute.xlu0 %1223
      %1225 = vrot.lane.b32.xlu0 %v1148, 64
      %v1226 = vpop.permute.xlu0 %1225
      %1227 = vrot.lane.b32.xlu0 %v1153, 64
      %v1228 = vpop.permute.xlu0 %1227
      %1229 = vrot.lane.b32.xlu0 %v1156, 64
      %v1230 = vpop.permute.xlu0 %1229
      %1231 = vrot.lane.b32.xlu0 %v1161, 64
      %v1232 = vpop.permute.xlu0 %1231
      %1233 = vrot.lane.b32.xlu0 %v1164, 64
      %v1234 = vpop.permute.xlu0 %1233
      %1235 = vrot.lane.b32.xlu0 %v1169, 64
      %v1236 = vpop.permute.xlu0 %1235
      %1237 = vrot.lane.b32.xlu0 %v1172, 64
      %v1238 = vpop.permute.xlu0 %1237
      %1255 = vst.msk [vmem:[#allocation2] sm:$0xff] %vm853, %v1208
      %1256 = vst.msk [vmem:[#allocation2 + $0x8] sm:$0xff] %vm853, %v1210
      %1257 = vst.msk [vmem:[#allocation2 + $0x10] sm:$0xff] %vm853, %v1212
      %1258 = vst.msk [vmem:[#allocation2 + $0x18] sm:$0xff] %vm853, %v1214
      %1259 = vst.msk [vmem:[#allocation2 + $0x20] sm:$0xff] %vm853, %v1216
      %1260 = vst.msk [vmem:[#allocation2 + $0x28] sm:$0xff] %vm853, %v1218
      %1261 = vst.msk [vmem:[#allocation2 + $0x30] sm:$0xff] %vm853, %v1220
      %1262 = vst.msk [vmem:[#allocation2 + $0x38] sm:$0xff] %vm853, %v1222
      %1263 = vst.msk [vmem:[#allocation2 + $0x40] sm:$0xff] %vm853, %v1224
      %1264 = vst.msk [vmem:[#allocation2 + $0x48] sm:$0xff] %vm853, %v1226
      %1265 = vst.msk [vmem:[#allocation2 + $0x50] sm:$0xff] %vm853, %v1228
      %1266 = vst.msk [vmem:[#allocation2 + $0x58] sm:$0xff] %vm853, %v1230
      %1267 = vst.msk [vmem:[#allocation2 + $0x60] sm:$0xff] %vm853, %v1232
      %1268 = vst.msk [vmem:[#allocation2 + $0x68] sm:$0xff] %vm853, %v1234
      %1269 = vst.msk [vmem:[#allocation2 + $0x70] sm:$0xff] %vm853, %v1236
      %1270 = vst.msk [vmem:[#allocation2 + $0x78] sm:$0xff] %vm853, %v1238
      %v1271 = vld [vmem:[#allocation2] sm:$0xff]
      %v1272 = vld [vmem:[#allocation2 + $0x8] sm:$0xff]
      %v1273 = vld [vmem:[#allocation2 + $0x10] sm:$0xff]
      %v1274 = vld [vmem:[#allocation2 + $0x18] sm:$0xff]
      %v1275 = vld [vmem:[#allocation2 + $0x20] sm:$0xff]
      %v1276 = vld [vmem:[#allocation2 + $0x28] sm:$0xff]
      %v1277 = vld [vmem:[#allocation2 + $0x30] sm:$0xff]
      %v1278 = vld [vmem:[#allocation2 + $0x38] sm:$0xff]
      %v1279 = vld [vmem:[#allocation2 + $0x40] sm:$0xff]
      %v1280 = vld [vmem:[#allocation2 + $0x48] sm:$0xff]
      %v1281 = vld [vmem:[#allocation2 + $0x50] sm:$0xff]
      %v1282 = vld [vmem:[#allocation2 + $0x58] sm:$0xff]
      %v1283 = vld [vmem:[#allocation2 + $0x60] sm:$0xff]
      %v1284 = vld [vmem:[#allocation2 + $0x68] sm:$0xff]
      %v1285 = vld [vmem:[#allocation2 + $0x70] sm:$0xff]
      %v1286 = vld [vmem:[#allocation2 + $0x78] sm:$0xff]
      %v1287 = vld [vmem:[%s5] sm:$0xff]
      %v1288 = vld [vmem:[%s5 + $0x8] sm:$0xff]
      %v1289 = vld [vmem:[%s5 + $0x10] sm:$0xff]
      %v1290 = vld [vmem:[%s5 + $0x18] sm:$0xff]
      %v1291 = vld [vmem:[%s5 + $0x20] sm:$0xff]
      %v1292 = vld [vmem:[%s5 + $0x28] sm:$0xff]
      %v1293 = vld [vmem:[%s5 + $0x30] sm:$0xff]
      %v1294 = vld [vmem:[%s5 + $0x38] sm:$0xff]
      %v1295 = vld [vmem:[%s5 + $0x40] sm:$0xff]
      %v1296 = vld [vmem:[%s5 + $0x48] sm:$0xff]
      %v1297 = vld [vmem:[%s5 + $0x50] sm:$0xff]
      %v1298 = vld [vmem:[%s5 + $0x58] sm:$0xff]
      %v1299 = vld [vmem:[%s5 + $0x60] sm:$0xff]
      %v1300 = vld [vmem:[%s5 + $0x68] sm:$0xff]
      %v1301 = vld [vmem:[%s5 + $0x70] sm:$0xff]
      %v1302 = vld [vmem:[%s5 + $0x78] sm:$0xff]
      %v1303 = vld [vmem:[%s6] sm:$0x1]
      %v1305 = vlaneseq
      %v1306 = vshrl.u32 %v1305, 7
      %v1307 = vsub.s32 0, %v1306
      %v1308 = vrot.slane %v1303, %v1307
      %1310 = vmatprep.subr.mxu0 0.0
      %1311 = vmatpush1.msra.mxu0 %v1287
      %1312 = vmatprep.subr.mxu0 0.0
      %1313 = vmatpush1.msra.mxu0 %v1288
      %1314 = vmatprep.subr.mxu0 0.0
      %1315 = vmatpush1.msra.mxu0 %v1289
      %1316 = vmatprep.subr.mxu0 0.0
      %1317 = vmatpush1.msra.mxu0 %v1290
      %1318 = vmatprep.subr.mxu0 0.0
      %1319 = vmatpush1.msra.mxu0 %v1291
      %1320 = vmatprep.subr.mxu0 0.0
      %1321 = vmatpush1.msra.mxu0 %v1292
      %1322 = vmatprep.subr.mxu0 0.0
      %1323 = vmatpush1.msra.mxu0 %v1293
      %1324 = vmatprep.subr.mxu0 0.0
      %1325 = vmatpush1.msra.mxu0 %v1294
      %1326 = vmatprep.subr.mxu0 0.0
      %1327 = vmatpush1.msra.mxu0 %v1295
      %1328 = vmatprep.subr.mxu0 0.0
      %1329 = vmatpush1.msra.mxu0 %v1296
      %1330 = vmatprep.subr.mxu0 0.0
      %1331 = vmatpush1.msra.mxu0 %v1297
      %1332 = vmatprep.subr.mxu0 0.0
      %1333 = vmatpush1.msra.mxu0 %v1298
      %1334 = vmatprep.subr.mxu0 0.0
      %1335 = vmatpush1.msra.mxu0 %v1299
      %1336 = vmatprep.subr.mxu0 0.0
      %1337 = vmatpush1.msra.mxu0 %v1300
      %1338 = vmatprep.subr.mxu0 0.0
      %1339 = vmatpush1.msra.mxu0 %v1301
      %1340 = vmatprep.subr.mxu0 0.0
      %1341 = vmatpush1.msra.mxu0 %v1302
      %1342 = vmatprep.subr.mxu0 0.0
      %1343 = vmatpush1.msra.mxu0 0.0
      %1344 = vmatprep.subr.mxu0 0.0
      %1345 = vmatpush1.msra.mxu0 0.0
      %1346 = vmatprep.subr.mxu0 0.0
      %1347 = vmatpush1.msra.mxu0 0.0
      %1348 = vmatprep.subr.mxu0 0.0
      %1349 = vmatpush1.msra.mxu0 0.0
      %1350 = vmatprep.subr.mxu0 0.0
      %1351 = vmatpush1.msra.mxu0 0.0
      %1352 = vmatprep.subr.mxu0 0.0
      %1353 = vmatpush1.msra.mxu0 0.0
      %1354 = vmatprep.subr.mxu0 0.0
      %1355 = vmatpush1.msra.mxu0 0.0
      %1356 = vmatprep.subr.mxu0 0.0
      %1357 = vmatpush1.msra.mxu0 0.0
      %1358 = vmatprep.subr.mxu0 0.0
      %1359 = vmatpush1.msra.mxu0 0.0
      %1360 = vmatprep.subr.mxu0 0.0
      %1361 = vmatpush1.msra.mxu0 0.0
      %1362 = vmatprep.subr.mxu0 0.0
      %1363 = vmatpush1.msra.mxu0 0.0
      %1364 = vmatprep.subr.mxu0 0.0
      %1365 = vmatpush1.msra.mxu0 0.0
      %1366 = vmatprep.subr.mxu0 0.0
      %1367 = vmatpush1.msra.mxu0 0.0
      %1368 = vmatprep.subr.mxu0 0.0
      %1369 = vmatpush1.msra.mxu0 0.0
      %1370 = vmatprep.subr.mxu0 0.0
      %1371 = vmatpush1.msra.mxu0 0.0
      %1372 = vmatprep.subr.mxu0 0.0
      %1373 = vmatpush1.msra.mxu0 0.0
      %1374 = vmatprep.mubr.f32.mxu0 0.0
      %1375 = vmatmul.mubr.f32.gmra.mrb[0].mxu0 %v1271
      %v1376 = vpop.f32.mrb[0].mxu0
      %v1377 = vadd.f32 %v1308, %v1376
      %v1378 = vpop.f32.mrb[0].mxu0
      %1379 = vmatprep.mubr.f32.mxu0 0.0
      %1380 = vmatmul.mubr.f32.gmra.mrb[0].mxu0 %v1272
      %v1381 = vpop.f32.mrb[0].mxu0
      %v1382 = vadd.f32 %v1308, %v1381
      %v1383 = vpop.f32.mrb[0].mxu0
      %1384 = vmatprep.mubr.f32.mxu0 0.0
      %1385 = vmatmul.mubr.f32.gmra.mrb[0].mxu0 %v1273
      %v1386 = vpop.f32.mrb[0].mxu0
      %v1387 = vadd.f32 %v1308, %v1386
      %v1388 = vpop.f32.mrb[0].mxu0
      %1389 = vmatprep.mubr.f32.mxu0 0.0
      %1390 = vmatmul.mubr.f32.gmra.mrb[0].mxu0 %v1274
      %v1391 = vpop.f32.mrb[0].mxu0
      %v1392 = vadd.f32 %v1308, %v1391
      %v1393 = vpop.f32.mrb[0].mxu0
      %1394 = vmatprep.mubr.f32.mxu0 0.0
      %1395 = vmatmul.mubr.f32.gmra.mrb[0].mxu0 %v1275
      %v1396 = vpop.f32.mrb[0].mxu0
      %v1397 = vadd.f32 %v1308, %v1396
      %v1398 = vpop.f32.mrb[0].mxu0
      %1399 = vmatprep.mubr.f32.mxu0 0.0
      %1400 = vmatmul.mubr.f32.gmra.mrb[0].mxu0 %v1276
      %v1401 = vpop.f32.mrb[0].mxu0
      %v1402 = vadd.f32 %v1308, %v1401
      %v1403 = vpop.f32.mrb[0].mxu0
      %1404 = vmatprep.mubr.f32.mxu0 0.0
      %1405 = vmatmul.mubr.f32.gmra.mrb[0].mxu0 %v1277
      %v1406 = vpop.f32.mrb[0].mxu0
      %v1407 = vadd.f32 %v1308, %v1406
      %v1408 = vpop.f32.mrb[0].mxu0
      %1409 = vmatprep.mubr.f32.mxu0 0.0
      %1410 = vmatmul.mubr.f32.gmra.mrb[0].mxu0 %v1278
      %v1411 = vpop.f32.mrb[0].mxu0
      %v1412 = vadd.f32 %v1308, %v1411
      %v1413 = vpop.f32.mrb[0].mxu0
      %1414 = vmatprep.mubr.f32.mxu0 0.0
      %1415 = vmatmul.mubr.f32.gmra.mrb[0].mxu0 %v1279
      %v1416 = vpop.f32.mrb[0].mxu0
      %v1417 = vadd.f32 %v1308, %v1416
      %v1418 = vpop.f32.mrb[0].mxu0
      %1419 = vmatprep.mubr.f32.mxu0 0.0
      %1420 = vmatmul.mubr.f32.gmra.mrb[0].mxu0 %v1280
      %v1421 = vpop.f32.mrb[0].mxu0
      %v1422 = vadd.f32 %v1308, %v1421
      %v1423 = vpop.f32.mrb[0].mxu0
      %1424 = vmatprep.mubr.f32.mxu0 0.0
      %1425 = vmatmul.mubr.f32.gmra.mrb[0].mxu0 %v1281
      %v1426 = vpop.f32.mrb[0].mxu0
      %v1427 = vadd.f32 %v1308, %v1426
      %v1428 = vpop.f32.mrb[0].mxu0
      %1429 = vmatprep.mubr.f32.mxu0 0.0
      %1430 = vmatmul.mubr.f32.gmra.mrb[0].mxu0 %v1282
      %v1431 = vpop.f32.mrb[0].mxu0
      %v1432 = vadd.f32 %v1308, %v1431
      %v1433 = vpop.f32.mrb[0].mxu0
      %1434 = vmatprep.mubr.f32.mxu0 0.0
      %1435 = vmatmul.mubr.f32.gmra.mrb[0].mxu0 %v1283
      %v1436 = vpop.f32.mrb[0].mxu0
      %v1437 = vadd.f32 %v1308, %v1436
      %v1438 = vpop.f32.mrb[0].mxu0
      %1439 = vmatprep.mubr.f32.mxu0 0.0
      %1440 = vmatmul.mubr.f32.gmra.mrb[0].mxu0 %v1284
      %v1441 = vpop.f32.mrb[0].mxu0
      %v1442 = vadd.f32 %v1308, %v1441
      %v1443 = vpop.f32.mrb[0].mxu0
      %1444 = vmatprep.mubr.f32.mxu0 0.0
      %1445 = vmatmul.mubr.f32.gmra.mrb[0].mxu0 %v1285
      %v1446 = vpop.f32.mrb[0].mxu0
      %v1447 = vadd.f32 %v1308, %v1446
      %v1448 = vpop.f32.mrb[0].mxu0
      %1449 = vmatprep.mubr.f32.mxu0 0.0
      %1450 = vmatmul.mubr.f32.gmra.mrb[0].mxu0 %v1286
      %v1451 = vpop.f32.mrb[0].mxu0
      %v1452 = vadd.f32 %v1308, %v1451
      %v1453 = vpop.f32.mrb[0].mxu0
      %1454 = vdwg.mxu0
      %v1455 = vmax.f32 %v1377, 0.0
      %v1456 = vmax.f32 %v1382, 0.0
      %v1457 = vmax.f32 %v1387, 0.0
      %v1458 = vmax.f32 %v1392, 0.0
      %v1459 = vmax.f32 %v1397, 0.0
      %v1460 = vmax.f32 %v1402, 0.0
      %v1461 = vmax.f32 %v1407, 0.0
      %v1462 = vmax.f32 %v1412, 0.0
      %v1463 = vmax.f32 %v1417, 0.0
      %v1464 = vmax.f32 %v1422, 0.0
      %v1465 = vmax.f32 %v1427, 0.0
      %v1466 = vmax.f32 %v1432, 0.0
      %v1467 = vmax.f32 %v1437, 0.0
      %v1468 = vmax.f32 %v1442, 0.0
      %v1469 = vmax.f32 %v1447, 0.0
      %v1470 = vmax.f32 %v1452, 0.0
      %v1471 = vpack.c.bf16 %v1456, %v1455
      %v1472 = vpack.c.bf16 %v1458, %v1457
      %v1473 = vpack.c.bf16 %v1460, %v1459
      %v1474 = vpack.c.bf16 %v1462, %v1461
      %v1475 = vpack.c.bf16 %v1464, %v1463
      %v1476 = vpack.c.bf16 %v1466, %v1465
      %v1477 = vpack.c.bf16 %v1468, %v1467
      %v1478 = vpack.c.bf16 %v1470, %v1469
      %1479 = vmatprep.subr.bf16.mxu0 0
      %1480 = vmatpush1.bf16.msra.mxu0 %v1471
      %1481 = vmatprep.subr.bf16.mxu0 0
      %1482 = vmatpush1.bf16.msra.mxu0 %v1472
      %1483 = vmatprep.subr.bf16.mxu0 0
      %1484 = vmatpush1.bf16.msra.mxu0 %v1473
      %1485 = vmatprep.subr.bf16.mxu0 0
      %1486 = vmatpush1.bf16.msra.mxu0 %v1474
      %1487 = vmatprep.subr.bf16.mxu0 0
      %1488 = vmatpush1.bf16.msra.mxu0 %v1475
      %1489 = vmatprep.subr.bf16.mxu0 0
      %1490 = vmatpush1.bf16.msra.mxu0 %v1476
      %1491 = vmatprep.subr.bf16.mxu0 0
      %1492 = vmatpush1.bf16.msra.mxu0 %v1477
      %1493 = vmatprep.subr.bf16.mxu0 0
      %1494 = vmatpush1.bf16.msra.mxu0 %v1478
      %1495 = vmatprep.subr.bf16.mxu0 0
      %1496 = vmatpush1.bf16.msra.mxu0 0
      %1497 = vmatprep.subr.bf16.mxu0 0
      %1498 = vmatpush1.bf16.msra.mxu0 0
      %1499 = vmatprep.subr.bf16.mxu0 0
      %1500 = vmatpush1.bf16.msra.mxu0 0
      %1501 = vmatprep.subr.bf16.mxu0 0
      %1502 = vmatpush1.bf16.msra.mxu0 0
      %1503 = vmatprep.subr.bf16.mxu0 0
      %1504 = vmatpush1.bf16.msra.mxu0 0
      %1505 = vmatprep.subr.bf16.mxu0 0
      %1506 = vmatpush1.bf16.msra.mxu0 0
      %1507 = vmatprep.subr.bf16.mxu0 0
      %1508 = vmatpush1.bf16.msra.mxu0 0
      %1509 = vmatprep.subr.bf16.mxu0 0
      %1510 = vmatpush1.bf16.msra.mxu0 0
      %1511 = vmatprep.mubr.bf16.mxu0 0
      %1512 = vmatmul.mubr.bf16.gmra.mrb[0].mxu0 %v659
      %v1513 = vpop.f32.mrb[0].mxu0
      %v1514 = vadd.f32 0.0, %v1513
      %v1515 = vpop.f32.mrb[0].mxu0
      %v1516 = vpop.f32.mrb[0].mxu0
      %v1517 = vadd.f32 0.0, %v1516
      %v1518 = vpop.f32.mrb[0].mxu0
      %1519 = vmatprep.mubr.bf16.mxu0 0
      %1520 = vmatmul.mubr.bf16.gmra.mrb[0].mxu0 %v660
      %v1521 = vpop.f32.mrb[0].mxu0
      %v1522 = vadd.f32 0.0, %v1521
      %v1523 = vpop.f32.mrb[0].mxu0
      %v1524 = vpop.f32.mrb[0].mxu0
      %v1525 = vadd.f32 0.0, %v1524
      %v1526 = vpop.f32.mrb[0].mxu0
      %1527 = vmatprep.mubr.bf16.mxu0 0
      %1528 = vmatmul.mubr.bf16.gmra.mrb[0].mxu0 %v661
      %v1529 = vpop.f32.mrb[0].mxu0
      %v1530 = vadd.f32 0.0, %v1529
      %v1531 = vpop.f32.mrb[0].mxu0
      %v1532 = vpop.f32.mrb[0].mxu0
      %v1533 = vadd.f32 0.0, %v1532
      %v1534 = vpop.f32.mrb[0].mxu0
      %1535 = vmatprep.mubr.bf16.mxu0 0
      %1536 = vmatmul.mubr.bf16.gmra.mrb[0].mxu0 %v662
      %v1537 = vpop.f32.mrb[0].mxu0
      %v1538 = vadd.f32 0.0, %v1537
      %v1539 = vpop.f32.mrb[0].mxu0
      %v1540 = vpop.f32.mrb[0].mxu0
      %v1541 = vadd.f32 0.0, %v1540
      %v1542 = vpop.f32.mrb[0].mxu0
      %1543 = vmatprep.mubr.bf16.mxu0 0
      %1544 = vmatmul.mubr.bf16.gmra.mrb[0].mxu0 %v663
      %v1545 = vpop.f32.mrb[0].mxu0
      %v1546 = vadd.f32 0.0, %v1545
      %v1547 = vpop.f32.mrb[0].mxu0
      %v1548 = vpop.f32.mrb[0].mxu0
      %v1549 = vadd.f32 0.0, %v1548
      %v1550 = vpop.f32.mrb[0].mxu0
      %1551 = vmatprep.mubr.bf16.mxu0 0
      %1552 = vmatmul.mubr.bf16.gmra.mrb[0].mxu0 %v664
      %v1553 = vpop.f32.mrb[0].mxu0
      %v1554 = vadd.f32 0.0, %v1553
      %v1555 = vpop.f32.mrb[0].mxu0
      %v1556 = vpop.f32.mrb[0].mxu0
      %v1557 = vadd.f32 0.0, %v1556
      %v1558 = vpop.f32.mrb[0].mxu0
      %1559 = vmatprep.mubr.bf16.mxu0 0
      %1560 = vmatmul.mubr.bf16.gmra.mrb[0].mxu0 %v665
      %v1561 = vpop.f32.mrb[0].mxu0
      %v1562 = vadd.f32 0.0, %v1561
      %v1563 = vpop.f32.mrb[0].mxu0
      %v1564 = vpop.f32.mrb[0].mxu0
      %v1565 = vadd.f32 0.0, %v1564
      %v1566 = vpop.f32.mrb[0].mxu0
      %1567 = vmatprep.mubr.bf16.mxu0 0
      %1568 = vmatmul.mubr.bf16.gmra.mrb[0].mxu0 %v666
      %v1569 = vpop.f32.mrb[0].mxu0
      %v1570 = vadd.f32 0.0, %v1569
      %v1571 = vpop.f32.mrb[0].mxu0
      %v1572 = vpop.f32.mrb[0].mxu0
      %v1573 = vadd.f32 0.0, %v1572
      %v1574 = vpop.f32.mrb[0].mxu0
      %1575 = vdwg.mxu0
      %1576 = vst.msk [vmem:[#allocation2] sm:$0xff] %vm772, %v1455
      %1577 = vst.msk [vmem:[#allocation2 + $0x8] sm:$0xff] %vm772, %v1456
      %1578 = vst.msk [vmem:[#allocation2 + $0x10] sm:$0xff] %vm772, %v1457
      %1579 = vst.msk [vmem:[#allocation2 + $0x18] sm:$0xff] %vm772, %v1458
      %1580 = vst.msk [vmem:[#allocation2 + $0x20] sm:$0xff] %vm772, %v1459
      %1581 = vst.msk [vmem:[#allocation2 + $0x28] sm:$0xff] %vm772, %v1460
      %1582 = vst.msk [vmem:[#allocation2 + $0x30] sm:$0xff] %vm772, %v1461
      %1583 = vst.msk [vmem:[#allocation2 + $0x38] sm:$0xff] %vm772, %v1462
      %1584 = vst.msk [vmem:[#allocation2 + $0x40] sm:$0xff] %vm772, %v1463
      %1585 = vst.msk [vmem:[#allocation2 + $0x48] sm:$0xff] %vm772, %v1464
      %1586 = vst.msk [vmem:[#allocation2 + $0x50] sm:$0xff] %vm772, %v1465
      %1587 = vst.msk [vmem:[#allocation2 + $0x58] sm:$0xff] %vm772, %v1466
      %1588 = vst.msk [vmem:[#allocation2 + $0x60] sm:$0xff] %vm772, %v1467
      %1589 = vst.msk [vmem:[#allocation2 + $0x68] sm:$0xff] %vm772, %v1468
      %1590 = vst.msk [vmem:[#allocation2 + $0x70] sm:$0xff] %vm772, %v1469
      %1591 = vst.msk [vmem:[#allocation2 + $0x78] sm:$0xff] %vm772, %v1470
      %1608 = vrot.lane.b32.xlu0 %v1514, 64
      %v1609 = vpop.permute.xlu0 %1608
      %1610 = vrot.lane.b32.xlu0 %v1517, 64
      %v1611 = vpop.permute.xlu0 %1610
      %1612 = vrot.lane.b32.xlu0 %v1522, 64
      %v1613 = vpop.permute.xlu0 %1612
      %1614 = vrot.lane.b32.xlu0 %v1525, 64
      %v1615 = vpop.permute.xlu0 %1614
      %1616 = vrot.lane.b32.xlu0 %v1530, 64
      %v1617 = vpop.permute.xlu0 %1616
      %1618 = vrot.lane.b32.xlu0 %v1533, 64
      %v1619 = vpop.permute.xlu0 %1618
      %1620 = vrot.lane.b32.xlu0 %v1538, 64
      %v1621 = vpop.permute.xlu0 %1620
      %1622 = vrot.lane.b32.xlu0 %v1541, 64
      %v1623 = vpop.permute.xlu0 %1622
      %1624 = vrot.lane.b32.xlu0 %v1546, 64
      %v1625 = vpop.permute.xlu0 %1624
      %1626 = vrot.lane.b32.xlu0 %v1549, 64
      %v1627 = vpop.permute.xlu0 %1626
      %1628 = vrot.lane.b32.xlu0 %v1554, 64
      %v1629 = vpop.permute.xlu0 %1628
      %1630 = vrot.lane.b32.xlu0 %v1557, 64
      %v1631 = vpop.permute.xlu0 %1630
      %1632 = vrot.lane.b32.xlu0 %v1562, 64
      %v1633 = vpop.permute.xlu0 %1632
      %1634 = vrot.lane.b32.xlu0 %v1565, 64
      %v1635 = vpop.permute.xlu0 %1634
      %1636 = vrot.lane.b32.xlu0 %v1570, 64
      %v1637 = vpop.permute.xlu0 %1636
      %1638 = vrot.lane.b32.xlu0 %v1573, 64
      %v1639 = vpop.permute.xlu0 %1638
      %1656 = vst.msk [vmem:[#allocation2] sm:$0xff] %vm853, %v1609
      %1657 = vst.msk [vmem:[#allocation2 + $0x8] sm:$0xff] %vm853, %v1611
      %1658 = vst.msk [vmem:[#allocation2 + $0x10] sm:$0xff] %vm853, %v1613
      %1659 = vst.msk [vmem:[#allocation2 + $0x18] sm:$0xff] %vm853, %v1615
      %1660 = vst.msk [vmem:[#allocation2 + $0x20] sm:$0xff] %vm853, %v1617
      %1661 = vst.msk [vmem:[#allocation2 + $0x28] sm:$0xff] %vm853, %v1619
      %1662 = vst.msk [vmem:[#allocation2 + $0x30] sm:$0xff] %vm853, %v1621
      %1663 = vst.msk [vmem:[#allocation2 + $0x38] sm:$0xff] %vm853, %v1623
      %1664 = vst.msk [vmem:[#allocation2 + $0x40] sm:$0xff] %vm853, %v1625
      %1665 = vst.msk [vmem:[#allocation2 + $0x48] sm:$0xff] %vm853, %v1627
      %1666 = vst.msk [vmem:[#allocation2 + $0x50] sm:$0xff] %vm853, %v1629
      %1667 = vst.msk [vmem:[#allocation2 + $0x58] sm:$0xff] %vm853, %v1631
      %1668 = vst.msk [vmem:[#allocation2 + $0x60] sm:$0xff] %vm853, %v1633
      %1669 = vst.msk [vmem:[#allocation2 + $0x68] sm:$0xff] %vm853, %v1635
      %1670 = vst.msk [vmem:[#allocation2 + $0x70] sm:$0xff] %vm853, %v1637
      %1671 = vst.msk [vmem:[#allocation2 + $0x78] sm:$0xff] %vm853, %v1639
      %v1672 = vld [vmem:[#allocation2] sm:$0xff]
      %v1673 = vld [vmem:[#allocation2 + $0x8] sm:$0xff]
      %v1674 = vld [vmem:[#allocation2 + $0x10] sm:$0xff]
      %v1675 = vld [vmem:[#allocation2 + $0x18] sm:$0xff]
      %v1676 = vld [vmem:[#allocation2 + $0x20] sm:$0xff]
      %v1677 = vld [vmem:[#allocation2 + $0x28] sm:$0xff]
      %v1678 = vld [vmem:[#allocation2 + $0x30] sm:$0xff]
      %v1679 = vld [vmem:[#allocation2 + $0x38] sm:$0xff]
      %v1680 = vld [vmem:[#allocation2 + $0x40] sm:$0xff]
      %v1681 = vld [vmem:[#allocation2 + $0x48] sm:$0xff]
      %v1682 = vld [vmem:[#allocation2 + $0x50] sm:$0xff]
      %v1683 = vld [vmem:[#allocation2 + $0x58] sm:$0xff]
      %v1684 = vld [vmem:[#allocation2 + $0x60] sm:$0xff]
      %v1685 = vld [vmem:[#allocation2 + $0x68] sm:$0xff]
      %v1686 = vld [vmem:[#allocation2 + $0x70] sm:$0xff]
      %v1687 = vld [vmem:[#allocation2 + $0x78] sm:$0xff]
      %v1688 = vld [vmem:[%s7] sm:$0xff]
      %v1689 = vld [vmem:[%s7 + $0x8] sm:$0xff]
      %v1690 = vld [vmem:[%s7 + $0x10] sm:$0xff]
      %v1691 = vld [vmem:[%s7 + $0x18] sm:$0xff]
      %v1692 = vld [vmem:[%s7 + $0x20] sm:$0xff]
      %v1693 = vld [vmem:[%s7 + $0x28] sm:$0xff]
      %v1694 = vld [vmem:[%s7 + $0x30] sm:$0xff]
      %v1695 = vld [vmem:[%s7 + $0x38] sm:$0xff]
      %v1696 = vld [vmem:[%s7 + $0x40] sm:$0xff]
      %v1697 = vld [vmem:[%s7 + $0x48] sm:$0xff]
      %v1698 = vld [vmem:[%s7 + $0x50] sm:$0xff]
      %v1699 = vld [vmem:[%s7 + $0x58] sm:$0xff]
      %v1700 = vld [vmem:[%s7 + $0x60] sm:$0xff]
      %v1701 = vld [vmem:[%s7 + $0x68] sm:$0xff]
      %v1702 = vld [vmem:[%s7 + $0x70] sm:$0xff]
      %v1703 = vld [vmem:[%s7 + $0x78] sm:$0xff]
      %v1704 = vld [vmem:[%s8] sm:$0x1]
      %v1706 = vlaneseq
      %v1707 = vshrl.u32 %v1706, 7
      %v1708 = vsub.s32 0, %v1707
      %v1709 = vrot.slane %v1704, %v1708
      %1711 = vmatprep.subr.mxu0 0.0
      %1712 = vmatpush1.msra.mxu0 %v1688
      %1713 = vmatprep.subr.mxu0 0.0
      %1714 = vmatpush1.msra.mxu0 %v1689
      %1715 = vmatprep.subr.mxu0 0.0
      %1716 = vmatpush1.msra.mxu0 %v1690
      %1717 = vmatprep.subr.mxu0 0.0
      %1718 = vmatpush1.msra.mxu0 %v1691
      %1719 = vmatprep.subr.mxu0 0.0
      %1720 = vmatpush1.msra.mxu0 %v1692
      %1721 = vmatprep.subr.mxu0 0.0
      %1722 = vmatpush1.msra.mxu0 %v1693
      %1723 = vmatprep.subr.mxu0 0.0
      %1724 = vmatpush1.msra.mxu0 %v1694
      %1725 = vmatprep.subr.mxu0 0.0
      %1726 = vmatpush1.msra.mxu0 %v1695
      %1727 = vmatprep.subr.mxu0 0.0
      %1728 = vmatpush1.msra.mxu0 %v1696
      %1729 = vmatprep.subr.mxu0 0.0
      %1730 = vmatpush1.msra.mxu0 %v1697
      %1731 = vmatprep.subr.mxu0 0.0
      %1732 = vmatpush1.msra.mxu0 %v1698
      %1733 = vmatprep.subr.mxu0 0.0
      %1734 = vmatpush1.msra.mxu0 %v1699
      %1735 = vmatprep.subr.mxu0 0.0
      %1736 = vmatpush1.msra.mxu0 %v1700
      %1737 = vmatprep.subr.mxu0 0.0
      %1738 = vmatpush1.msra.mxu0 %v1701
      %1739 = vmatprep.subr.mxu0 0.0
      %1740 = vmatpush1.msra.mxu0 %v1702
      %1741 = vmatprep.subr.mxu0 0.0
      %1742 = vmatpush1.msra.mxu0 %v1703
      %1743 = vmatprep.subr.mxu0 0.0
      %1744 = vmatpush1.msra.mxu0 0.0
      %1745 = vmatprep.subr.mxu0 0.0
      %1746 = vmatpush1.msra.mxu0 0.0
      %1747 = vmatprep.subr.mxu0 0.0
      %1748 = vmatpush1.msra.mxu0 0.0
      %1749 = vmatprep.subr.mxu0 0.0
      %1750 = vmatpush1.msra.mxu0 0.0
      %1751 = vmatprep.subr.mxu0 0.0
      %1752 = vmatpush1.msra.mxu0 0.0
      %1753 = vmatprep.subr.mxu0 0.0
      %1754 = vmatpush1.msra.mxu0 0.0
      %1755 = vmatprep.subr.mxu0 0.0
      %1756 = vmatpush1.msra.mxu0 0.0
      %1757 = vmatprep.subr.mxu0 0.0
      %1758 = vmatpush1.msra.mxu0 0.0
      %1759 = vmatprep.subr.mxu0 0.0
      %1760 = vmatpush1.msra.mxu0 0.0
      %1761 = vmatprep.subr.mxu0 0.0
      %1762 = vmatpush1.msra.mxu0 0.0
      %1763 = vmatprep.subr.mxu0 0.0
      %1764 = vmatpush1.msra.mxu0 0.0
      %1765 = vmatprep.subr.mxu0 0.0
      %1766 = vmatpush1.msra.mxu0 0.0
      %1767 = vmatprep.subr.mxu0 0.0
      %1768 = vmatpush1.msra.mxu0 0.0
      %1769 = vmatprep.subr.mxu0 0.0
      %1770 = vmatpush1.msra.mxu0 0.0
      %1771 = vmatprep.subr.mxu0 0.0
      %1772 = vmatpush1.msra.mxu0 0.0
      %1773 = vmatprep.subr.mxu0 0.0
      %1774 = vmatpush1.msra.mxu0 0.0
      %1775 = vmatprep.mubr.f32.mxu0 0.0
      %1776 = vmatmul.mubr.f32.gmra.mrb[0].mxu0 %v1672
      %v1777 = vpop.f32.mrb[0].mxu0
      %v1778 = vadd.f32 %v1709, %v1777
      %v1779 = vpop.f32.mrb[0].mxu0
      %1780 = vmatprep.mubr.f32.mxu0 0.0
      %1781 = vmatmul.mubr.f32.gmra.mrb[0].mxu0 %v1673
      %v1782 = vpop.f32.mrb[0].mxu0
      %v1783 = vadd.f32 %v1709, %v1782
      %v1784 = vpop.f32.mrb[0].mxu0
      %1785 = vmatprep.mubr.f32.mxu0 0.0
      %1786 = vmatmul.mubr.f32.gmra.mrb[0].mxu0 %v1674
      %v1787 = vpop.f32.mrb[0].mxu0
      %v1788 = vadd.f32 %v1709, %v1787
      %v1789 = vpop.f32.mrb[0].mxu0
      %1790 = vmatprep.mubr.f32.mxu0 0.0
      %1791 = vmatmul.mubr.f32.gmra.mrb[0].mxu0 %v1675
      %v1792 = vpop.f32.mrb[0].mxu0
      %v1793 = vadd.f32 %v1709, %v1792
      %v1794 = vpop.f32.mrb[0].mxu0
      %1795 = vmatprep.mubr.f32.mxu0 0.0
      %1796 = vmatmul.mubr.f32.gmra.mrb[0].mxu0 %v1676
      %v1797 = vpop.f32.mrb[0].mxu0
      %v1798 = vadd.f32 %v1709, %v1797
      %v1799 = vpop.f32.mrb[0].mxu0
      %1800 = vmatprep.mubr.f32.mxu0 0.0
      %1801 = vmatmul.mubr.f32.gmra.mrb[0].mxu0 %v1677
      %v1802 = vpop.f32.mrb[0].mxu0
      %v1803 = vadd.f32 %v1709, %v1802
      %v1804 = vpop.f32.mrb[0].mxu0
      %1805 = vmatprep.mubr.f32.mxu0 0.0
      %1806 = vmatmul.mubr.f32.gmra.mrb[0].mxu0 %v1678
      %v1807 = vpop.f32.mrb[0].mxu0
      %v1808 = vadd.f32 %v1709, %v1807
      %v1809 = vpop.f32.mrb[0].mxu0
      %1810 = vmatprep.mubr.f32.mxu0 0.0
      %1811 = vmatmul.mubr.f32.gmra.mrb[0].mxu0 %v1679
      %v1812 = vpop.f32.mrb[0].mxu0
      %v1813 = vadd.f32 %v1709, %v1812
      %v1814 = vpop.f32.mrb[0].mxu0
      %1815 = vmatprep.mubr.f32.mxu0 0.0
      %1816 = vmatmul.mubr.f32.gmra.mrb[0].mxu0 %v1680
      %v1817 = vpop.f32.mrb[0].mxu0
      %v1818 = vadd.f32 %v1709, %v1817
      %v1819 = vpop.f32.mrb[0].mxu0
      %1820 = vmatprep.mubr.f32.mxu0 0.0
      %1821 = vmatmul.mubr.f32.gmra.mrb[0].mxu0 %v1681
      %v1822 = vpop.f32.mrb[0].mxu0
      %v1823 = vadd.f32 %v1709, %v1822
      %v1824 = vpop.f32.mrb[0].mxu0
      %1825 = vmatprep.mubr.f32.mxu0 0.0
      %1826 = vmatmul.mubr.f32.gmra.mrb[0].mxu0 %v1682
      %v1827 = vpop.f32.mrb[0].mxu0
      %v1828 = vadd.f32 %v1709, %v1827
      %v1829 = vpop.f32.mrb[0].mxu0
      %1830 = vmatprep.mubr.f32.mxu0 0.0
      %1831 = vmatmul.mubr.f32.gmra.mrb[0].mxu0 %v1683
      %v1832 = vpop.f32.mrb[0].mxu0
      %v1833 = vadd.f32 %v1709, %v1832
      %v1834 = vpop.f32.mrb[0].mxu0
      %1835 = vmatprep.mubr.f32.mxu0 0.0
      %1836 = vmatmul.mubr.f32.gmra.mrb[0].mxu0 %v1684
      %v1837 = vpop.f32.mrb[0].mxu0
      %v1838 = vadd.f32 %v1709, %v1837
      %v1839 = vpop.f32.mrb[0].mxu0
      %1840 = vmatprep.mubr.f32.mxu0 0.0
      %1841 = vmatmul.mubr.f32.gmra.mrb[0].mxu0 %v1685
      %v1842 = vpop.f32.mrb[0].mxu0
      %v1843 = vadd.f32 %v1709, %v1842
      %v1844 = vpop.f32.mrb[0].mxu0
      %1845 = vmatprep.mubr.f32.mxu0 0.0
      %1846 = vmatmul.mubr.f32.gmra.mrb[0].mxu0 %v1686
      %v1847 = vpop.f32.mrb[0].mxu0
      %v1848 = vadd.f32 %v1709, %v1847
      %v1849 = vpop.f32.mrb[0].mxu0
      %1850 = vmatprep.mubr.f32.mxu0 0.0
      %1851 = vmatmul.mubr.f32.gmra.mrb[0].mxu0 %v1687
      %v1852 = vpop.f32.mrb[0].mxu0
      %v1853 = vadd.f32 %v1709, %v1852
      %v1854 = vpop.f32.mrb[0].mxu0
      %1855 = vdwg.mxu0
      %v1856 = vmax.f32 %v1778, 0.0
      %v1857 = vmax.f32 %v1783, 0.0
      %v1858 = vmax.f32 %v1788, 0.0
      %v1859 = vmax.f32 %v1793, 0.0
      %v1860 = vmax.f32 %v1798, 0.0
      %v1861 = vmax.f32 %v1803, 0.0
      %v1862 = vmax.f32 %v1808, 0.0
      %v1863 = vmax.f32 %v1813, 0.0
      %v1864 = vmax.f32 %v1818, 0.0
      %v1865 = vmax.f32 %v1823, 0.0
      %v1866 = vmax.f32 %v1828, 0.0
      %v1867 = vmax.f32 %v1833, 0.0
      %v1868 = vmax.f32 %v1838, 0.0
      %v1869 = vmax.f32 %v1843, 0.0
      %v1870 = vmax.f32 %v1848, 0.0
      %v1871 = vmax.f32 %v1853, 0.0
      %v1872 = vld [vmem:[%s581] sm:$0xff]
      %1873 = vmatprep.subr.mxu0 0.0
      %1874 = vmatpush1.msra.mxu0 %v1856
      %1875 = vmatprep.subr.mxu0 0.0
      %1876 = vmatpush1.msra.mxu0 %v1857
      %1877 = vmatprep.subr.mxu0 0.0
      %1878 = vmatpush1.msra.mxu0 %v1858
      %1879 = vmatprep.subr.mxu0 0.0
      %1880 = vmatpush1.msra.mxu0 %v1859
      %1881 = vmatprep.subr.mxu0 0.0
      %1882 = vmatpush1.msra.mxu0 %v1860
      %1883 = vmatprep.subr.mxu0 0.0
      %1884 = vmatpush1.msra.mxu0 %v1861
      %1885 = vmatprep.subr.mxu0 0.0
      %1886 = vmatpush1.msra.mxu0 %v1862
      %1887 = vmatprep.subr.mxu0 0.0
      %1888 = vmatpush1.msra.mxu0 %v1863
      %1889 = vmatprep.subr.mxu0 0.0
      %1890 = vmatpush1.msra.mxu0 %v1864
      %1891 = vmatprep.subr.mxu0 0.0
      %1892 = vmatpush1.msra.mxu0 %v1865
      %1893 = vmatprep.subr.mxu0 0.0
      %1894 = vmatpush1.msra.mxu0 %v1866
      %1895 = vmatprep.subr.mxu0 0.0
      %1896 = vmatpush1.msra.mxu0 %v1867
      %1897 = vmatprep.subr.mxu0 0.0
      %1898 = vmatpush1.msra.mxu0 %v1868
      %1899 = vmatprep.subr.mxu0 0.0
      %1900 = vmatpush1.msra.mxu0 %v1869
      %1901 = vmatprep.subr.mxu0 0.0
      %1902 = vmatpush1.msra.mxu0 %v1870
      %1903 = vmatprep.subr.mxu0 0.0
      %1904 = vmatpush1.msra.mxu0 %v1871
      %1905 = vmatprep.subr.mxu0 0.0
      %1906 = vmatpush1.msra.mxu0 0.0
      %1907 = vmatprep.subr.mxu0 0.0
      %1908 = vmatpush1.msra.mxu0 0.0
      %1909 = vmatprep.subr.mxu0 0.0
      %1910 = vmatpush1.msra.mxu0 0.0
      %1911 = vmatprep.subr.mxu0 0.0
      %1912 = vmatpush1.msra.mxu0 0.0
      %1913 = vmatprep.subr.mxu0 0.0
      %1914 = vmatpush1.msra.mxu0 0.0
      %1915 = vmatprep.subr.mxu0 0.0
      %1916 = vmatpush1.msra.mxu0 0.0
      %1917 = vmatprep.subr.mxu0 0.0
      %1918 = vmatpush1.msra.mxu0 0.0
      %1919 = vmatprep.subr.mxu0 0.0
      %1920 = vmatpush1.msra.mxu0 0.0
      %1921 = vmatprep.subr.mxu0 0.0
      %1922 = vmatpush1.msra.mxu0 0.0
      %1923 = vmatprep.subr.mxu0 0.0
      %1924 = vmatpush1.msra.mxu0 0.0
      %1925 = vmatprep.subr.mxu0 0.0
      %1926 = vmatpush1.msra.mxu0 0.0
      %1927 = vmatprep.subr.mxu0 0.0
      %1928 = vmatpush1.msra.mxu0 0.0
      %1929 = vmatprep.subr.mxu0 0.0
      %1930 = vmatpush1.msra.mxu0 0.0
      %1931 = vmatprep.subr.mxu0 0.0
      %1932 = vmatpush1.msra.mxu0 0.0
      %1933 = vmatprep.subr.mxu0 0.0
      %1934 = vmatpush1.msra.mxu0 0.0
      %1935 = vmatprep.subr.mxu0 0.0
      %1936 = vmatpush1.msra.mxu0 0.0
      %1937 = vmatprep.mubr.f32.mxu0 0.0
      %1938 = vmatmul.mubr.f32.gmra.mrb[0].mxu0 %v1872
      %v1939 = vpop.f32.mrb[0].mxu0
      %v1940 = vadd.f32 0.0, %v1939
      %v1941 = vpop.f32.mrb[0].mxu0
      %1942 = vdwg.mxu0
      %v1943 = vld [vmem:[%s9] sm:$0xff]
      %v1944 = vld [vmem:[%s9 + $0x8] sm:$0xff]
      %v1945 = vld [vmem:[%s9 + $0x10] sm:$0xff]
      %v1946 = vld [vmem:[%s9 + $0x18] sm:$0xff]
      %v1947 = vld [vmem:[%s9 + $0x20] sm:$0xff]
      %v1948 = vld [vmem:[%s9 + $0x28] sm:$0xff]
      %v1949 = vld [vmem:[%s9 + $0x30] sm:$0xff]
      %v1950 = vld [vmem:[%s9 + $0x38] sm:$0xff]
      %v1951 = vld [vmem:[%s10] sm:$0x1]
      %v1953 = vlaneseq
      %v1954 = vshrl.u32 %v1953, 7
      %v1955 = vsub.s32 0, %v1954
      %v1956 = vrot.slane %v1951, %v1955
      %v1959 = vsel %vm772, %v1940, 0
      %1961 = vmatprep.subr.mxu0 0.0
      %1962 = vmatpush1.msra.mxu0 %v1943
      %1963 = vmatprep.subr.mxu0 0.0
      %1964 = vmatpush1.msra.mxu0 %v1944
      %1965 = vmatprep.subr.mxu0 0.0
      %1966 = vmatpush1.msra.mxu0 %v1945
      %1967 = vmatprep.subr.mxu0 0.0
      %1968 = vmatpush1.msra.mxu0 %v1946
      %1969 = vmatprep.subr.mxu0 0.0
      %1970 = vmatpush1.msra.mxu0 %v1947
      %1971 = vmatprep.subr.mxu0 0.0
      %1972 = vmatpush1.msra.mxu0 %v1948
      %1973 = vmatprep.subr.mxu0 0.0
      %1974 = vmatpush1.msra.mxu0 %v1949
      %1975 = vmatprep.subr.mxu0 0.0
      %1976 = vmatpush1.msra.mxu0 %v1950
      %1977 = vmatprep.subr.mxu0 0.0
      %1978 = vmatpush1.msra.mxu0 0.0
      %1979 = vmatprep.subr.mxu0 0.0
      %1980 = vmatpush1.msra.mxu0 0.0
      %1981 = vmatprep.subr.mxu0 0.0
      %1982 = vmatpush1.msra.mxu0 0.0
      %1983 = vmatprep.subr.mxu0 0.0
      %1984 = vmatpush1.msra.mxu0 0.0
      %1985 = vmatprep.subr.mxu0 0.0
      %1986 = vmatpush1.msra.mxu0 0.0
      %1987 = vmatprep.subr.mxu0 0.0
      %1988 = vmatpush1.msra.mxu0 0.0
      %1989 = vmatprep.subr.mxu0 0.0
      %1990 = vmatpush1.msra.mxu0 0.0
      %1991 = vmatprep.subr.mxu0 0.0
      %1992 = vmatpush1.msra.mxu0 0.0
      %1993 = vmatprep.subr.mxu0 0.0
      %1994 = vmatpush1.msra.mxu0 0.0
      %1995 = vmatprep.subr.mxu0 0.0
      %1996 = vmatpush1.msra.mxu0 0.0
      %1997 = vmatprep.subr.mxu0 0.0
      %1998 = vmatpush1.msra.mxu0 0.0
      %1999 = vmatprep.subr.mxu0 0.0
      %2000 = vmatpush1.msra.mxu0 0.0
      %2001 = vmatprep.subr.mxu0 0.0
      %2002 = vmatpush1.msra.mxu0 0.0
      %2003 = vmatprep.subr.mxu0 0.0
      %2004 = vmatpush1.msra.mxu0 0.0
      %2005 = vmatprep.subr.mxu0 0.0
      %2006 = vmatpush1.msra.mxu0 0.0
      %2007 = vmatprep.subr.mxu0 0.0
      %2008 = vmatpush1.msra.mxu0 0.0
      %2009 = vmatprep.subr.mxu0 0.0
      %2010 = vmatpush1.msra.mxu0 0.0
      %2011 = vmatprep.subr.mxu0 0.0
      %2012 = vmatpush1.msra.mxu0 0.0
      %2013 = vmatprep.subr.mxu0 0.0
      %2014 = vmatpush1.msra.mxu0 0.0
      %2015 = vmatprep.subr.mxu0 0.0
      %2016 = vmatpush1.msra.mxu0 0.0
      %2017 = vmatprep.subr.mxu0 0.0
      %2018 = vmatpush1.msra.mxu0 0.0
      %2019 = vmatprep.subr.mxu0 0.0
      %2020 = vmatpush1.msra.mxu0 0.0
      %2021 = vmatprep.subr.mxu0 0.0
      %2022 = vmatpush1.msra.mxu0 0.0
      %2023 = vmatprep.subr.mxu0 0.0
      %2024 = vmatpush1.msra.mxu0 0.0
      %2025 = vmatprep.mubr.f32.mxu0 0.0
      %2026 = vmatmul.mubr.f32.gmra.mrb[0].mxu0 %v1959
      %v2027 = vpop.f32.mrb[0].mxu0
      %v2028 = vadd.f32 %v1956, %v2027
      %v2029 = vpop.f32.mrb[0].mxu0
      %2030 = vdwg.mxu0
      %v2031 = vmax.f32 %v2028, 0.0
      %v2032 = vld [vmem:[%s11] sm:$0xff]
      %v2033 = vld [vmem:[%s11 + $0x8] sm:$0xff]
      %v2034 = vld [vmem:[%s11 + $0x10] sm:$0xff]
      %v2035 = vld [vmem:[%s11 + $0x18] sm:$0xff]
      %v2036 = vld [vmem:[%s11 + $0x20] sm:$0xff]
      %v2037 = vld [vmem:[%s11 + $0x28] sm:$0xff]
      %v2038 = vld [vmem:[%s11 + $0x30] sm:$0xff]
      %v2039 = vld [vmem:[%s11 + $0x38] sm:$0xff]
      %v2040 = vld [vmem:[%s12] sm:$0x1]
      %v2042 = vlaneseq
      %v2043 = vshrl.u32 %v2042, 7
      %v2044 = vsub.s32 0, %v2043
      %v2045 = vrot.slane %v2040, %v2044
      %v2048 = vsel %vm772, %v2031, 0
      %2050 = vmatprep.subr.mxu0 0.0
      %2051 = vmatpush1.msra.mxu0 %v2032
      %2052 = vmatprep.subr.mxu0 0.0
      %2053 = vmatpush1.msra.mxu0 %v2033
      %2054 = vmatprep.subr.mxu0 0.0
      %2055 = vmatpush1.msra.mxu0 %v2034
      %2056 = vmatprep.subr.mxu0 0.0
      %2057 = vmatpush1.msra.mxu0 %v2035
      %2058 = vmatprep.subr.mxu0 0.0
      %2059 = vmatpush1.msra.mxu0 %v2036
      %2060 = vmatprep.subr.mxu0 0.0
      %2061 = vmatpush1.msra.mxu0 %v2037
      %2062 = vmatprep.subr.mxu0 0.0
      %2063 = vmatpush1.msra.mxu0 %v2038
      %2064 = vmatprep.subr.mxu0 0.0
      %2065 = vmatpush1.msra.mxu0 %v2039
      %2066 = vmatprep.subr.mxu0 0.0
      %2067 = vmatpush1.msra.mxu0 0.0
      %2068 = vmatprep.subr.mxu0 0.0
      %2069 = vmatpush1.msra.mxu0 0.0
      %2070 = vmatprep.subr.mxu0 0.0
      %2071 = vmatpush1.msra.mxu0 0.0
      %2072 = vmatprep.subr.mxu0 0.0
      %2073 = vmatpush1.msra.mxu0 0.0
      %2074 = vmatprep.subr.mxu0 0.0
      %2075 = vmatpush1.msra.mxu0 0.0
      %2076 = vmatprep.subr.mxu0 0.0
      %2077 = vmatpush1.msra.mxu0 0.0
      %2078 = vmatprep.subr.mxu0 0.0
      %2079 = vmatpush1.msra.mxu0 0.0
      %2080 = vmatprep.subr.mxu0 0.0
      %2081 = vmatpush1.msra.mxu0 0.0
      %2082 = vmatprep.subr.mxu0 0.0
      %2083 = vmatpush1.msra.mxu0 0.0
      %2084 = vmatprep.subr.mxu0 0.0
      %2085 = vmatpush1.msra.mxu0 0.0
      %2086 = vmatprep.subr.mxu0 0.0
      %2087 = vmatpush1.msra.mxu0 0.0
      %2088 = vmatprep.subr.mxu0 0.0
      %2089 = vmatpush1.msra.mxu0 0.0
      %2090 = vmatprep.subr.mxu0 0.0
      %2091 = vmatpush1.msra.mxu0 0.0
      %2092 = vmatprep.subr.mxu0 0.0
      %2093 = vmatpush1.msra.mxu0 0.0
      %2094 = vmatprep.subr.mxu0 0.0
      %2095 = vmatpush1.msra.mxu0 0.0
      %2096 = vmatprep.subr.mxu0 0.0
      %2097 = vmatpush1.msra.mxu0 0.0
      %2098 = vmatprep.subr.mxu0 0.0
      %2099 = vmatpush1.msra.mxu0 0.0
      %2100 = vmatprep.subr.mxu0 0.0
      %2101 = vmatpush1.msra.mxu0 0.0
      %2102 = vmatprep.subr.mxu0 0.0
      %2103 = vmatpush1.msra.mxu0 0.0
      %2104 = vmatprep.subr.mxu0 0.0
      %2105 = vmatpush1.msra.mxu0 0.0
      %2106 = vmatprep.subr.mxu0 0.0
      %2107 = vmatpush1.msra.mxu0 0.0
      %2108 = vmatprep.subr.mxu0 0.0
      %2109 = vmatpush1.msra.mxu0 0.0
      %2110 = vmatprep.subr.mxu0 0.0
      %2111 = vmatpush1.msra.mxu0 0.0
      %2112 = vmatprep.subr.mxu0 0.0
      %2113 = vmatpush1.msra.mxu0 0.0
      %2114 = vmatprep.mubr.f32.mxu0 0.0
      %2115 = vmatmul.mubr.f32.gmra.mrb[0].mxu0 %v2048
      %v2116 = vpop.f32.mrb[0].mxu0
      %v2117 = vadd.f32 %v2045, %v2116
      %v2118 = vpop.f32.mrb[0].mxu0
      %2119 = vdwg.mxu0
      %v2120 = vmax.f32 %v2117, 0.0
      %v2121 = vld [vmem:[%s13] sm:$0xff]
      %v2122 = vld [vmem:[%s13 + $0x8] sm:$0xff]
      %v2123 = vld [vmem:[%s13 + $0x10] sm:$0xff]
      %v2124 = vld [vmem:[%s13 + $0x18] sm:$0xff]
      %v2125 = vld [vmem:[%s13 + $0x20] sm:$0xff]
      %v2126 = vld [vmem:[%s13 + $0x28] sm:$0xff]
      %v2127 = vld [vmem:[%s13 + $0x30] sm:$0xff]
      %v2128 = vld [vmem:[%s13 + $0x38] sm:$0xff]
      %v2129 = vld [vmem:[%s14] sm:$0x1]
      %v2131 = vlaneseq
      %v2132 = vshrl.u32 %v2131, 7
      %v2133 = vsub.s32 0, %v2132
      %v2134 = vrot.slane %v2129, %v2133
      %v2137 = vsel %vm772, %v2120, 0
      %2139 = vmatprep.subr.mxu0 0.0
      %2140 = vmatpush1.msra.mxu0 %v2121
      %2141 = vmatprep.subr.mxu0 0.0
      %2142 = vmatpush1.msra.mxu0 %v2122
      %2143 = vmatprep.subr.mxu0 0.0
      %2144 = vmatpush1.msra.mxu0 %v2123
      %2145 = vmatprep.subr.mxu0 0.0
      %2146 = vmatpush1.msra.mxu0 %v2124
      %2147 = vmatprep.subr.mxu0 0.0
      %2148 = vmatpush1.msra.mxu0 %v2125
      %2149 = vmatprep.subr.mxu0 0.0
      %2150 = vmatpush1.msra.mxu0 %v2126
      %2151 = vmatprep.subr.mxu0 0.0
      %2152 = vmatpush1.msra.mxu0 %v2127
      %2153 = vmatprep.subr.mxu0 0.0
      %2154 = vmatpush1.msra.mxu0 %v2128
      %2155 = vmatprep.subr.mxu0 0.0
      %2156 = vmatpush1.msra.mxu0 0.0
      %2157 = vmatprep.subr.mxu0 0.0
      %2158 = vmatpush1.msra.mxu0 0.0
      %2159 = vmatprep.subr.mxu0 0.0
      %2160 = vmatpush1.msra.mxu0 0.0
      %2161 = vmatprep.subr.mxu0 0.0
      %2162 = vmatpush1.msra.mxu0 0.0
      %2163 = vmatprep.subr.mxu0 0.0
      %2164 = vmatpush1.msra.mxu0 0.0
      %2165 = vmatprep.subr.mxu0 0.0
      %2166 = vmatpush1.msra.mxu0 0.0
      %2167 = vmatprep.subr.mxu0 0.0
      %2168 = vmatpush1.msra.mxu0 0.0
      %2169 = vmatprep.subr.mxu0 0.0
      %2170 = vmatpush1.msra.mxu0 0.0
      %2171 = vmatprep.subr.mxu0 0.0
      %2172 = vmatpush1.msra.mxu0 0.0
      %2173 = vmatprep.subr.mxu0 0.0
      %2174 = vmatpush1.msra.mxu0 0.0
      %2175 = vmatprep.subr.mxu0 0.0
      %2176 = vmatpush1.msra.mxu0 0.0
      %2177 = vmatprep.subr.mxu0 0.0
      %2178 = vmatpush1.msra.mxu0 0.0
      %2179 = vmatprep.subr.mxu0 0.0
      %2180 = vmatpush1.msra.mxu0 0.0
      %2181 = vmatprep.subr.mxu0 0.0
      %2182 = vmatpush1.msra.mxu0 0.0
      %2183 = vmatprep.subr.mxu0 0.0
      %2184 = vmatpush1.msra.mxu0 0.0
      %2185 = vmatprep.subr.mxu0 0.0
      %2186 = vmatpush1.msra.mxu0 0.0
      %2187 = vmatprep.subr.mxu0 0.0
      %2188 = vmatpush1.msra.mxu0 0.0
      %2189 = vmatprep.subr.mxu0 0.0
      %2190 = vmatpush1.msra.mxu0 0.0
      %2191 = vmatprep.subr.mxu0 0.0
      %2192 = vmatpush1.msra.mxu0 0.0
      %2193 = vmatprep.subr.mxu0 0.0
      %2194 = vmatpush1.msra.mxu0 0.0
      %2195 = vmatprep.subr.mxu0 0.0
      %2196 = vmatpush1.msra.mxu0 0.0
      %2197 = vmatprep.subr.mxu0 0.0
      %2198 = vmatpush1.msra.mxu0 0.0
      %2199 = vmatprep.subr.mxu0 0.0
      %2200 = vmatpush1.msra.mxu0 0.0
      %2201 = vmatprep.subr.mxu0 0.0
      %2202 = vmatpush1.msra.mxu0 0.0
      %2203 = vmatprep.mubr.f32.mxu0 0.0
      %2204 = vmatmul.mubr.f32.gmra.mrb[0].mxu0 %v2137
      %v2205 = vpop.f32.mrb[0].mxu0
      %v2206 = vadd.f32 %v2134, %v2205
      %v2207 = vpop.f32.mrb[0].mxu0
      %2208 = vdwg.mxu0
      %v2209 = vmax.f32 %v2206, 0.0
      %v2210 = vld [vmem:[%s15] sm:$0xff]
      %v2211 = vld [vmem:[%s15 + $0x8] sm:$0xff]
      %v2212 = vld [vmem:[%s15 + $0x10] sm:$0xff]
      %v2213 = vld [vmem:[%s15 + $0x18] sm:$0xff]
      %v2214 = vld [vmem:[%s15 + $0x20] sm:$0xff]
      %v2215 = vld [vmem:[%s15 + $0x28] sm:$0xff]
      %v2216 = vld [vmem:[%s15 + $0x30] sm:$0xff]
      %v2217 = vld [vmem:[%s15 + $0x38] sm:$0xff]
      %v2218 = vld [vmem:[%s16] sm:$0x1]
      %v2220 = vlaneseq
      %v2221 = vshrl.u32 %v2220, 7
      %v2222 = vsub.s32 0, %v2221
      %v2223 = vrot.slane %v2218, %v2222
      %v2226 = vsel %vm772, %v2209, 0
      %2228 = vmatprep.subr.mxu0 0.0
      %2229 = vmatpush1.msra.mxu0 %v2210
      %2230 = vmatprep.subr.mxu0 0.0
      %2231 = vmatpush1.msra.mxu0 %v2211
      %2232 = vmatprep.subr.mxu0 0.0
      %2233 = vmatpush1.msra.mxu0 %v2212
      %2234 = vmatprep.subr.mxu0 0.0
      %2235 = vmatpush1.msra.mxu0 %v2213
      %2236 = vmatprep.subr.mxu0 0.0
      %2237 = vmatpush1.msra.mxu0 %v2214
      %2238 = vmatprep.subr.mxu0 0.0
      %2239 = vmatpush1.msra.mxu0 %v2215
      %2240 = vmatprep.subr.mxu0 0.0
      %2241 = vmatpush1.msra.mxu0 %v2216
      %2242 = vmatprep.subr.mxu0 0.0
      %2243 = vmatpush1.msra.mxu0 %v2217
      %2244 = vmatprep.subr.mxu0 0.0
      %2245 = vmatpush1.msra.mxu0 0.0
      %2246 = vmatprep.subr.mxu0 0.0
      %2247 = vmatpush1.msra.mxu0 0.0
      %2248 = vmatprep.subr.mxu0 0.0
      %2249 = vmatpush1.msra.mxu0 0.0
      %2250 = vmatprep.subr.mxu0 0.0
      %2251 = vmatpush1.msra.mxu0 0.0
      %2252 = vmatprep.subr.mxu0 0.0
      %2253 = vmatpush1.msra.mxu0 0.0
      %2254 = vmatprep.subr.mxu0 0.0
      %2255 = vmatpush1.msra.mxu0 0.0
      %2256 = vmatprep.subr.mxu0 0.0
      %2257 = vmatpush1.msra.mxu0 0.0
      %2258 = vmatprep.subr.mxu0 0.0
      %2259 = vmatpush1.msra.mxu0 0.0
      %2260 = vmatprep.subr.mxu0 0.0
      %2261 = vmatpush1.msra.mxu0 0.0
      %2262 = vmatprep.subr.mxu0 0.0
      %2263 = vmatpush1.msra.mxu0 0.0
      %2264 = vmatprep.subr.mxu0 0.0
      %2265 = vmatpush1.msra.mxu0 0.0
      %2266 = vmatprep.subr.mxu0 0.0
      %2267 = vmatpush1.msra.mxu0 0.0
      %2268 = vmatprep.subr.mxu0 0.0
      %2269 = vmatpush1.msra.mxu0 0.0
      %2270 = vmatprep.subr.mxu0 0.0
      %2271 = vmatpush1.msra.mxu0 0.0
      %2272 = vmatprep.subr.mxu0 0.0
      %2273 = vmatpush1.msra.mxu0 0.0
      %2274 = vmatprep.subr.mxu0 0.0
      %2275 = vmatpush1.msra.mxu0 0.0
      %2276 = vmatprep.subr.mxu0 0.0
      %2277 = vmatpush1.msra.mxu0 0.0
      %2278 = vmatprep.subr.mxu0 0.0
      %2279 = vmatpush1.msra.mxu0 0.0
      %2280 = vmatprep.subr.mxu0 0.0
      %2281 = vmatpush1.msra.mxu0 0.0
      %2282 = vmatprep.subr.mxu0 0.0
      %2283 = vmatpush1.msra.mxu0 0.0
      %2284 = vmatprep.subr.mxu0 0.0
      %2285 = vmatpush1.msra.mxu0 0.0
      %2286 = vmatprep.subr.mxu0 0.0
      %2287 = vmatpush1.msra.mxu0 0.0
      %2288 = vmatprep.subr.mxu0 0.0
      %2289 = vmatpush1.msra.mxu0 0.0
      %2290 = vmatprep.subr.mxu0 0.0
      %2291 = vmatpush1.msra.mxu0 0.0
      %2292 = vmatprep.mubr.f32.mxu0 0.0
      %2293 = vmatmul.mubr.f32.gmra.mrb[0].mxu0 %v2226
      %v2294 = vpop.f32.mrb[0].mxu0
      %v2295 = vadd.f32 %v2223, %v2294
      %v2296 = vpop.f32.mrb[0].mxu0
      %2297 = vdwg.mxu0
      %2298 = vst [vmem:[%s585] sm:$0xff] %v2295
      %p2299 = scmp.lt.s32.totalorder %s28, 1
      %s2300 = scalar_select %p2299, %s28, 1
      %s2301 = smul.addr %s2300, 8
      %s2302 = scalar_lea.vmem %s17, %s2301
      // Predicated region
      $region89: #{gcn_classifier_forward.1} parent=87 // pred_check
        %p2303 = pneg %p418
      $region90: #{gcn_classifier_forward.1} parent=87 // pred_check_branch
        %2305 = sbr.rel (%p2303) target = $region92
      $region91: #{gcn_classifier_forward.1} parent=87 // pred_region
        _
      $region92: #{gcn_classifier_forward.1} parent=87 // pred_fallthru
        _
    $region88: #{gcn_classifier_forward.1} parent=5 // pred_fallthru
      _
    %p2306 = scmp.le.s32.totalorder 2, %s23
    // Predicated region
    $region93: #{gcn_classifier_forward.1} parent=5 // pred_check
      %p2307 = pneg %p2306
    $region94: #{gcn_classifier_forward.1} parent=5 // pred_check_branch
      %2309 = sbr.rel (%p2307) target = $region96
    $region95: #{gcn_classifier_forward.1} parent=5 // pred_region
      %s2310 = ssub.s32 %s23, 2
      // Predicated region
      $region97: #{gcn_classifier_forward.1} parent=95 // pred_check
        %p2311 = pneg %p424
      $region98: #{gcn_classifier_forward.1} parent=95 // pred_check_branch
        %2313 = sbr.rel (%p2311) target = $region100
      $region99: #{gcn_classifier_forward.1} parent=95 // pred_region
        %p2314 = scmp.lt.s32.totalorder %s29, 1
        %s2315 = scalar_select %p2314, %s29, 1
        %s2316 = smul.addr %s2315, 8
        %s2317 = scalar_lea.vmem %s17, %s2316
      $region100: #{gcn_classifier_forward.1} parent=95 // pred_fallthru
        _
    $region96: #{gcn_classifier_forward.1} parent=5 // pred_fallthru
      _
  $region6: #{gcn_classifier_forward.1} parent=0 // loop_footer
    %s27 = sadd.s32 1, %s23
  $region7: #{gcn_classifier_forward.1} parent=0 // loop_footer_branch
    %22 = sbr.rel target = $region3
  $region8: #{gcn_classifier_forward.1} parent=0 // loop_exit
    _

</llo_original>
